<compile_context>
chip_gen: v5e
topology: v5e:2x2
jax: 0.10.0
libtpu: 0.0.40
codegen_flags: <defaults>
</compile_context>

<pallas_src>
import functools

import jax
import jax.numpy as jnp
from jax.experimental import pallas as pl
from jax.experimental.pallas import tpu as pltpu


KEY_ORDER = ["pprev", "prev", "next", "nnext"]
DIRECTIONS = {"prev": 1, "next": -1, "pprev": 2, "nnext": -2}
EMPTIES = {"prev": [0], "next": [-1], "pprev": [0, 1], "nnext": [-2, -1]}
NUM_DIR = len(KEY_ORDER)


# ----------------------------- Pallas kernels ----------------------------- #

def _encoder_kernel(x_ref, w1_ref, b1_ref, w2_ref, b2_ref,
                    slab_ref, sum_ref, *, n_tokens):
    """Fused DeepEncoder (2-layer MLP) + per-frame token sum.

    x_ref    : [tbt * n_tokens, in_dim]        this tile's tokens (frame-major)
    slab_ref : [tbt, (4 + n_tokens) * dim]     lane-dense final-output slab tile
    sum_ref  : [tbt, dim]                      sum over tokens of enc (per frame)
    """
    rows = x_ref.shape[0]
    dim = w1_ref.shape[1]
    tbt = rows // n_tokens
    nctx = NUM_DIR * dim

    h = jnp.dot(x_ref[...], w1_ref[...], preferred_element_type=jnp.float32)
    h = jnp.maximum(h + b1_ref[...], 0.0)
    enc = jnp.dot(h, w2_ref[...], preferred_element_type=jnp.float32)
    enc = enc + b2_ref[...]                              # [rows, dim] f32

    enc3 = enc.reshape(tbt, n_tokens, dim)               # minor dim unchanged
    sum_ref[...] = jnp.sum(enc3, axis=1)

    # Context columns are filled by the context kernel (aliased output); zero
    # them here so the slab never carries uninitialized VMEM.
    slab_ref[:, :nctx] = jnp.zeros((tbt, nctx), slab_ref.dtype)
    # Lane-dense placement of the encoded tokens: token j -> dim-wide chunk.
    for j in range(n_tokens):
        slab_ref[:, nctx + j * dim:nctx + (j + 1) * dim] = enc3[:, j, :]


def _context_kernel(slab_hbm_ref, s_ref, w_ref, b_ref, slab_out_ref):
    """ctx = shifted_frame_sums @ W_blockdiag + masked_bias.

    Writes the 4*dim (=128-lane at dim=32) context columns directly into the
    pass-1 slab (aliased via input_output_aliases); enc columns stay untouched.
    """
    del slab_hbm_ref  # aliased full slab; not read here
    slab_out_ref[...] = (
        jnp.dot(s_ref[...], w_ref[...], preferred_element_type=jnp.float32)
        + b_ref[...])


# ------------------------------ pallas_call wrappers ----------------------- #

def _row_tile(n_rows, bytes_per_row, vmem_budget_bytes=4 * 1024 * 1024):
    """Frames per grid step: as many as fit a modest VMEM budget (x2 for
    double-buffering), multiple of 8 for clean sublane tiling, or the full
    extent when small.  Conservative enough for v7x's 64 MiB VMEM."""
    cap = max(8, min(1024, vmem_budget_bytes // max(bytes_per_row, 1)))
    cap = (cap // 8) * 8
    return n_rows if n_rows <= cap else cap


def _encode_pallas(x2, w1, b1, w2, b2, *, n_tokens, ncols):
    rows, in_dim = x2.shape
    bt = rows // n_tokens
    dim = w1.shape[1]
    bytes_per_frame = 4 * (n_tokens * in_dim + ncols + dim)
    tbt = _row_tile(bt, bytes_per_frame)
    kernel = functools.partial(_encoder_kernel, n_tokens=n_tokens)
    return pl.pallas_call(
        kernel,
        out_shape=(jax.ShapeDtypeStruct((bt, ncols), jnp.float32),
                   jax.ShapeDtypeStruct((bt, dim), jnp.float32)),
        grid=(pl.cdiv(bt, tbt),),
        in_specs=[
            pl.BlockSpec((tbt * n_tokens, in_dim), lambda i: (i, 0)),
            pl.BlockSpec((in_dim, dim), lambda i: (0, 0)),
            pl.BlockSpec((1, dim), lambda i: (0, 0)),
            pl.BlockSpec((dim, dim), lambda i: (0, 0)),
            pl.BlockSpec((1, dim), lambda i: (0, 0)),
        ],
        out_specs=(pl.BlockSpec((tbt, ncols), lambda i: (i, 0)),
                   pl.BlockSpec((tbt, dim), lambda i: (i, 0))),
        compiler_params=pltpu.CompilerParams(
            dimension_semantics=("parallel",)),
    )(x2, w1, b1, w2, b2)


def _context_pallas(slab, shifted, w_bd, bias):
    bt, ncols = slab.shape
    nctx = shifted.shape[1]
    tbt = _row_tile(bt, 4 * 3 * nctx)
    return pl.pallas_call(
        _context_kernel,
        out_shape=jax.ShapeDtypeStruct((bt, ncols), jnp.float32),
        grid=(pl.cdiv(bt, tbt),),
        in_specs=[
            pl.BlockSpec(memory_space=pl.ANY),               # aliased slab (raw)
            pl.BlockSpec((tbt, nctx), lambda i: (i, 0)),     # shifted sums
            pl.BlockSpec((nctx, nctx), lambda i: (0, 0)),    # block-diag weights
            pl.BlockSpec((tbt, nctx), lambda i: (i, 0)),     # masked bias
        ],
        out_specs=pl.BlockSpec((tbt, nctx), lambda i: (i, 0)),
        input_output_aliases={0: 0},
        compiler_params=pltpu.CompilerParams(
            dimension_semantics=("parallel",)),
    )(slab, shifted, w_bd, bias)


# ------------------------------ module forward ----------------------------- #

def _shift_time(x, shift):
    """out[:, t] = x[:, t - shift] if 0 <= t - shift < T else 0
    (== roll(x, shift, axis=1) followed by zero-filling the wrapped frames)."""
    b, t, d = x.shape
    a = abs(shift)
    if a == 0:
        return x
    if a >= t:
        return jnp.zeros_like(x)
    pad = jnp.zeros((b, a, d), x.dtype)
    if shift > 0:
        return jnp.concatenate([pad, x[:, :t - a]], axis=1)
    return jnp.concatenate([x[:, a:], pad], axis=1)


def _block_diag(mats):
    n = len(mats)
    d = mats[0].shape[0]
    out = jnp.zeros((n * d, n * d), mats[0].dtype)
    for j, m in enumerate(mats):
        out = out.at[j * d:(j + 1) * d, j * d:(j + 1) * d].set(m)
    return out


@jax.jit
def temporal_encoder_ex_forward(feature, params):
    """feature: [B, T, N, in_dim] -> [B, T, 4 + N, dim]"""
    B, T, N, in_dim = feature.shape
    dim = params["enc_w1"].shape[1]
    BT = B * T
    nctx = NUM_DIR * dim
    ncols = nctx + N * dim

    # ---- pass 1: fused encoder + per-frame token sums (tiled, pipelined) ----
    x2 = feature.reshape(BT * N, in_dim).astype(jnp.float32)
    slab, sums = _encode_pallas(
        x2, params["enc_w1"], params["enc_b1"],
        params["enc_w2"], params["enc_b2"], n_tokens=N, ncols=ncols)

    # ---- tiny trace-level prep (all of size ~B*T*4*dim, << enc) ----
    sums3 = sums.reshape(B, T, dim)
    shifted = jnp.concatenate(
        [_shift_time(sums3, DIRECTIONS[k]) for k in KEY_ORDER],
        axis=-1).reshape(BT, nctx)
    # mean/Linear commuted; 1/N folded into the stacked block-diagonal weight.
    w_bd = _block_diag([params["ctx_w"][k] * (1.0 / N) for k in KEY_ORDER])
    t_idx = jnp.arange(T)
    valid = jnp.stack(
        [((t_idx - DIRECTIONS[k]) >= 0) & ((t_idx - DIRECTIONS[k]) < T)
         for k in KEY_ORDER], axis=-1)                         # [T, 4]
    b_stack = jnp.stack([params["ctx_b"][k] for k in KEY_ORDER], axis=0)
    bias_t = jnp.where(valid[:, :, None], b_stack[None], 0.0)  # [T, 4, dim]
    bias = jnp.broadcast_to(bias_t.reshape(1, T, nctx),
                            (B, T, nctx)).reshape(BT, nctx)

    # ---- pass 2: contexts written into columns [0, 4*dim) of the slab ----
    out = _context_pallas(slab, shifted, w_bd, bias)
    return out.reshape(B, T, NUM_DIR + N, dim)


# ------------------------------ pure-JAX reference ------------------------- #

def _reference_forward(feature, params):
    B, T, N, in_dim = feature.shape
    h = jnp.maximum(feature @ params["enc_w1"] + params["enc_b1"][0], 0.0)
    enc4 = h @ params["enc_w2"] + params["enc_b2"][0]
    fs = []
    for k in KEY_ORDER:
        y = enc4 @ params["ctx_w"][k] + params["ctx_b"][k]
        ctx = y.mean(axis=-2)
        ctx = jnp.roll(ctx, DIRECTIONS[k], axis=1)
        for empty in EMPTIES[k]:
            size = empty + 1 if empty >= 0 else -empty
            if T >= size:
                ctx = ctx.at[:, empty].set(0.0)
        fs.append(ctx[:, :, None, :])
    return jnp.concatenate(fs + [enc4], axis=-2)


# ----------------------------------- main ---------------------------------- #

if __name__ == "__main__":
    B, T, N, in_dim, dim = 2, 8, 16, 4, 32

    key = jax.random.PRNGKey(0)
    ks = jax.random.split(key, 16)

    def _init(k, shape, fan_in):
        bound = 1.0 / jnp.sqrt(float(fan_in))
        return jax.random.uniform(k, shape, jnp.float32, -bound, bound)

    params = {
        "enc_w1": _init(ks[0], (in_dim, dim), in_dim),
        "enc_b1": _init(ks[1], (1, dim), in_dim),
        "enc_w2": _init(ks[2], (dim, dim), dim),
        "enc_b2": _init(ks[3], (1, dim), dim),
        "ctx_w": {},
        "ctx_b": {},
    }
    for i, k in enumerate(KEY_ORDER):
        params["ctx_w"][k] = _init(ks[4 + 2 * i], (dim, dim), dim)
        params["ctx_b"][k] = _init(ks[5 + 2 * i], (dim,), dim)

    feature = jax.random.normal(ks[15], (B, T, N, in_dim), jnp.float32)

    out = temporal_encoder_ex_forward(feature, params)
    out = jax.block_until_ready(out)

    assert out.shape == (B, T, 4 + N, dim), out.shape
    ref = jax.block_until_ready(_reference_forward(feature, params))
    assert jnp.allclose(out, ref, atol=1e-4, rtol=1e-4), "mismatch vs reference"

    print("KERNEL_OK")
</pallas_src>

<mosaic_0001>
module attributes {stable_mosaic.version = 11 : i64} {
  func.func @_context_kernel(%arg0: i32, %arg1: memref<16x640xf32, #tpu.memory_space<any>>, %arg2: memref<16x128xf32, #tpu.memory_space<vmem>>, %arg3: memref<128x128xf32, #tpu.memory_space<vmem>>, %arg4: memref<16x128xf32, #tpu.memory_space<vmem>>, %arg5: memref<16x128xf32, #tpu.memory_space<vmem>>) attributes {dimension_semantics = [#tpu.dimension_semantics<parallel>], iteration_bounds = array<i64: 1>, scalar_prefetch = 0 : i64, scratch_operands = 0 : i64, tpu.core_type = #tpu.core_type<tc>, window_params = [{}, {transform_indices = @transform_1, window_bounds = array<i64: 16, 128>}, {pipeline_mode = #tpu.pipeline_mode<synchronous>, transform_indices = @transform_2, window_bounds = array<i64: 128, 128>}, {transform_indices = @transform_3, window_bounds = array<i64: 16, 128>}, {transform_indices = @transform_4, window_bounds = array<i64: 16, 128>}]} {
    %c0 = arith.constant 0 : index
    %c0_0 = arith.constant 0 : index
    %0 = vector.load %arg2[%c0, %c0_0] : memref<16x128xf32, #tpu.memory_space<vmem>>, vector<16x128xf32>
    %c0_1 = arith.constant 0 : index
    %c0_2 = arith.constant 0 : index
    %1 = vector.load %arg3[%c0_1, %c0_2] : memref<128x128xf32, #tpu.memory_space<vmem>>, vector<128x128xf32>
    %cst = arith.constant dense<0.000000e+00> : vector<16x128xf32>
    %2 = tpu.matmul %0, %1, %cst {dimension_numbers = #tpu.dot_dimension_numbers<[1], [0], [0], [1], [0, 0, 1, 1], [], []>} : vector<16x128xf32>, vector<128x128xf32>, vector<16x128xf32> -> vector<16x128xf32>
    %c0_3 = arith.constant 0 : index
    %c0_4 = arith.constant 0 : index
    %3 = vector.load %arg4[%c0_3, %c0_4] : memref<16x128xf32, #tpu.memory_space<vmem>>, vector<16x128xf32>
    %4 = arith.addf %2, %3 : vector<16x128xf32>
    %c0_5 = arith.constant 0 : index
    %c0_6 = arith.constant 0 : index
    %5 = vector.load %arg5[%c0_5, %c0_6] : memref<16x128xf32, #tpu.memory_space<vmem>>, vector<16x128xf32>
    tpu.vector_store %arg5[%c0_5, %c0_6], %4 {strides = array<i32>} : memref<16x128xf32, #tpu.memory_space<vmem>>, vector<16x128xf32>,
    return
  }
  func.func @transform_1(%arg0: i32) -> (i32, i32) {
    %c0_i32 = arith.constant 0 : i32
    %c0_i32_0 = arith.constant 0 : i32
    return %arg0, %c0_i32 : i32, i32
  }
  func.func @transform_2(%arg0: i32) -> (i32, i32) {
    %c0_i32 = arith.constant 0 : i32
    %c0_i32_0 = arith.constant 0 : i32
    %c0_i32_1 = arith.constant 0 : i32
    return %c0_i32, %c0_i32_0 : i32, i32
  }
  func.func @transform_3(%arg0: i32) -> (i32, i32) {
    %c0_i32 = arith.constant 0 : i32
    %c0_i32_0 = arith.constant 0 : i32
    return %arg0, %c0_i32 : i32, i32
  }
  func.func @transform_4(%arg0: i32) -> (i32, i32) {
    %c0_i32 = arith.constant 0 : i32
    %c0_i32_0 = arith.constant 0 : i32
    return %arg0, %c0_i32 : i32, i32
  }
}

module attributes {stable_mosaic.version = 11 : i64} {
  func.func @_encoder_kernel(%arg0: i32, %arg1: memref<256x4xf32, #tpu.memory_space<vmem>>, %arg2: memref<4x32xf32, #tpu.memory_space<vmem>>, %arg3: memref<1x32xf32, #tpu.memory_space<vmem>>, %arg4: memref<32x32xf32, #tpu.memory_space<vmem>>, %arg5: memref<1x32xf32, #tpu.memory_space<vmem>>, %arg6: memref<16x640xf32, #tpu.memory_space<vmem>>, %arg7: memref<16x32xf32, #tpu.memory_space<vmem>>) attributes {dimension_semantics = [#tpu.dimension_semantics<parallel>], iteration_bounds = array<i64: 1>, scalar_prefetch = 0 : i64, scratch_operands = 0 : i64, tpu.core_type = #tpu.core_type<tc>, window_params = [{transform_indices = @transform_0, window_bounds = array<i64: 256, 4>}, {pipeline_mode = #tpu.pipeline_mode<synchronous>, transform_indices = @transform_1, window_bounds = array<i64: 4, 32>}, {pipeline_mode = #tpu.pipeline_mode<synchronous>, transform_indices = @transform_2, window_bounds = array<i64: 1, 32>}, {pipeline_mode = #tpu.pipeline_mode<synchronous>, transform_indices = @transform_3, window_bounds = array<i64: 32, 32>}, {pipeline_mode = #tpu.pipeline_mode<synchronous>, transform_indices = @transform_4, window_bounds = array<i64: 1, 32>}, {transform_indices = @transform_5, window_bounds = array<i64: 16, 640>}, {transform_indices = @transform_6, window_bounds = array<i64: 16, 32>}]} {
    %c0 = arith.constant 0 : index
    %c0_0 = arith.constant 0 : index
    %0 = vector.load %arg1[%c0, %c0_0] : memref<256x4xf32, #tpu.memory_space<vmem>>, vector<256x4xf32>
    %c0_1 = arith.constant 0 : index
    %c0_2 = arith.constant 0 : index
    %1 = vector.load %arg2[%c0_1, %c0_2] : memref<4x32xf32, #tpu.memory_space<vmem>>, vector<4x32xf32>
    %cst = arith.constant dense<0.000000e+00> : vector<256x32xf32>
    %2 = tpu.matmul %0, %1, %cst {dimension_numbers = #tpu.dot_dimension_numbers<[1], [0], [0], [1], [0, 0, 1, 1], [], []>} : vector<256x4xf32>, vector<4x32xf32>, vector<256x32xf32> -> vector<256x32xf32>
    %c0_3 = arith.constant 0 : index
    %c0_4 = arith.constant 0 : index
    %3 = vector.load %arg3[%c0_3, %c0_4] : memref<1x32xf32, #tpu.memory_space<vmem>>, vector<1x32xf32>
    %4 = vector.broadcast %3 : vector<1x32xf32> to vector<256x32xf32>
    %5 = arith.addf %2, %4 : vector<256x32xf32>
    %cst_5 = arith.constant 0.000000e+00 : f32
    %6 = vector.broadcast %cst_5 : f32 to vector<256x32xf32>
    %7 = arith.maximumf %5, %6 : vector<256x32xf32>
    %c0_6 = arith.constant 0 : index
    %c0_7 = arith.constant 0 : index
    %8 = vector.load %arg4[%c0_6, %c0_7] : memref<32x32xf32, #tpu.memory_space<vmem>>, vector<32x32xf32>
    %cst_8 = arith.constant dense<0.000000e+00> : vector<256x32xf32>
    %9 = tpu.matmul %7, %8, %cst_8 {dimension_numbers = #tpu.dot_dimension_numbers<[1], [0], [0], [1], [0, 0, 1, 1], [], []>} : vector<256x32xf32>, vector<32x32xf32>, vector<256x32xf32> -> vector<256x32xf32>
    %c0_9 = arith.constant 0 : index
    %c0_10 = arith.constant 0 : index
    %10 = vector.load %arg5[%c0_9, %c0_10] : memref<1x32xf32, #tpu.memory_space<vmem>>, vector<1x32xf32>
    %11 = vector.broadcast %10 : vector<1x32xf32> to vector<256x32xf32>
    %12 = arith.addf %9, %11 : vector<256x32xf32>
    %13 = vector.shape_cast %12 : vector<256x32xf32> to vector<16x16x32xf32>
    %cst_11 = arith.constant dense<0.000000e+00> : vector<16x32xf32>
    %14 = vector.multi_reduction <add>, %13, %cst_11 [1] : vector<16x16x32xf32> to vector<16x32xf32>
    %c0_12 = arith.constant 0 : index
    %c0_13 = arith.constant 0 : index
    %15 = vector.load %arg7[%c0_12, %c0_13] : memref<16x32xf32, #tpu.memory_space<vmem>>, vector<16x32xf32>
    tpu.vector_store %arg7[%c0_12, %c0_13], %14 {strides = array<i32>} : memref<16x32xf32, #tpu.memory_space<vmem>>, vector<16x32xf32>,
    %cst_14 = arith.constant 0.000000e+00 : f32
    %16 = vector.broadcast %cst_14 : f32 to vector<16x128xf32>
    %c0_15 = arith.constant 0 : index
    %c0_16 = arith.constant 0 : index
    %17 = vector.load %arg6[%c0_15, %c0_16] : memref<16x640xf32, #tpu.memory_space<vmem>>, vector<16x128xf32>
    tpu.vector_store %arg6[%c0_15, %c0_16], %16 {strides = array<i32>} : memref<16x640xf32, #tpu.memory_space<vmem>>, vector<16x128xf32>,
    %18 = vector.extract_strided_slice %13 {offsets = [0, 0, 0], sizes = [16, 1, 32], strides = [1, 1, 1]} : vector<16x16x32xf32> to vector<16x1x32xf32>
    %19 = vector.shape_cast %18 : vector<16x1x32xf32> to vector<16x32xf32>
    %c0_17 = arith.constant 0 : index
    %c128 = arith.constant 128 : index
    %20 = vector.load %arg6[%c0_17, %c128] : memref<16x640xf32, #tpu.memory_space<vmem>>, vector<16x32xf32>
    tpu.vector_store %arg6[%c0_17, %c128], %19 {strides = array<i32>} : memref<16x640xf32, #tpu.memory_space<vmem>>, vector<16x32xf32>,
    %21 = vector.extract_strided_slice %13 {offsets = [0, 1, 0], sizes = [16, 1, 32], strides = [1, 1, 1]} : vector<16x16x32xf32> to vector<16x1x32xf32>
    %22 = vector.shape_cast %21 : vector<16x1x32xf32> to vector<16x32xf32>
    %c0_18 = arith.constant 0 : index
    %c160 = arith.constant 160 : index
    %23 = vector.load %arg6[%c0_18, %c160] : memref<16x640xf32, #tpu.memory_space<vmem>>, vector<16x32xf32>
    tpu.vector_store %arg6[%c0_18, %c160], %22 {strides = array<i32>} : memref<16x640xf32, #tpu.memory_space<vmem>>, vector<16x32xf32>,
    %24 = vector.extract_strided_slice %13 {offsets = [0, 2, 0], sizes = [16, 1, 32], strides = [1, 1, 1]} : vector<16x16x32xf32> to vector<16x1x32xf32>
    %25 = vector.shape_cast %24 : vector<16x1x32xf32> to vector<16x32xf32>
    %c0_19 = arith.constant 0 : index
    %c192 = arith.constant 192 : index
    %26 = vector.load %arg6[%c0_19, %c192] : memref<16x640xf32, #tpu.memory_space<vmem>>, vector<16x32xf32>
    tpu.vector_store %arg6[%c0_19, %c192], %25 {strides = array<i32>} : memref<16x640xf32, #tpu.memory_space<vmem>>, vector<16x32xf32>,
    %27 = vector.extract_strided_slice %13 {offsets = [0, 3, 0], sizes = [16, 1, 32], strides = [1, 1, 1]} : vector<16x16x32xf32> to vector<16x1x32xf32>
    %28 = vector.shape_cast %27 : vector<16x1x32xf32> to vector<16x32xf32>
    %c0_20 = arith.constant 0 : index
    %c224 = arith.constant 224 : index
    %29 = vector.load %arg6[%c0_20, %c224] : memref<16x640xf32, #tpu.memory_space<vmem>>, vector<16x32xf32>
    tpu.vector_store %arg6[%c0_20, %c224], %28 {strides = array<i32>} : memref<16x640xf32, #tpu.memory_space<vmem>>, vector<16x32xf32>,
    %30 = vector.extract_strided_slice %13 {offsets = [0, 4, 0], sizes = [16, 1, 32], strides = [1, 1, 1]} : vector<16x16x32xf32> to vector<16x1x32xf32>
    %31 = vector.shape_cast %30 : vector<16x1x32xf32> to vector<16x32xf32>
    %c0_21 = arith.constant 0 : index
    %c256 = arith.constant 256 : index
    %32 = vector.load %arg6[%c0_21, %c256] : memref<16x640xf32, #tpu.memory_space<vmem>>, vector<16x32xf32>
    tpu.vector_store %arg6[%c0_21, %c256], %31 {strides = array<i32>} : memref<16x640xf32, #tpu.memory_space<vmem>>, vector<16x32xf32>,
    %33 = vector.extract_strided_slice %13 {offsets = [0, 5, 0], sizes = [16, 1, 32], strides = [1, 1, 1]} : vector<16x16x32xf32> to vector<16x1x32xf32>
    %34 = vector.shape_cast %33 : vector<16x1x32xf32> to vector<16x32xf32>
    %c0_22 = arith.constant 0 : index
    %c288 = arith.constant 288 : index
    %35 = vector.load %arg6[%c0_22, %c288] : memref<16x640xf32, #tpu.memory_space<vmem>>, vector<16x32xf32>
    tpu.vector_store %arg6[%c0_22, %c288], %34 {strides = array<i32>} : memref<16x640xf32, #tpu.memory_space<vmem>>, vector<16x32xf32>,
    %36 = vector.extract_strided_slice %13 {offsets = [0, 6, 0], sizes = [16, 1, 32], strides = [1, 1, 1]} : vector<16x16x32xf32> to vector<16x1x32xf32>
    %37 = vector.shape_cast %36 : vector<16x1x32xf32> to vector<16x32xf32>
    %c0_23 = arith.constant 0 : index
    %c320 = arith.constant 320 : index
    %38 = vector.load %arg6[%c0_23, %c320] : memref<16x640xf32, #tpu.memory_space<vmem>>, vector<16x32xf32>
    tpu.vector_store %arg6[%c0_23, %c320], %37 {strides = array<i32>} : memref<16x640xf32, #tpu.memory_space<vmem>>, vector<16x32xf32>,
    %39 = vector.extract_strided_slice %13 {offsets = [0, 7, 0], sizes = [16, 1, 32], strides = [1, 1, 1]} : vector<16x16x32xf32> to vector<16x1x32xf32>
    %40 = vector.shape_cast %39 : vector<16x1x32xf32> to vector<16x32xf32>
    %c0_24 = arith.constant 0 : index
    %c352 = arith.constant 352 : index
    %41 = vector.load %arg6[%c0_24, %c352] : memref<16x640xf32, #tpu.memory_space<vmem>>, vector<16x32xf32>
    tpu.vector_store %arg6[%c0_24, %c352], %40 {strides = array<i32>} : memref<16x640xf32, #tpu.memory_space<vmem>>, vector<16x32xf32>,
    %42 = vector.extract_strided_slice %13 {offsets = [0, 8, 0], sizes = [16, 1, 32], strides = [1, 1, 1]} : vector<16x16x32xf32> to vector<16x1x32xf32>
    %43 = vector.shape_cast %42 : vector<16x1x32xf32> to vector<16x32xf32>
    %c0_25 = arith.constant 0 : index
    %c384 = arith.constant 384 : index
    %44 = vector.load %arg6[%c0_25, %c384] : memref<16x640xf32, #tpu.memory_space<vmem>>, vector<16x32xf32>
    tpu.vector_store %arg6[%c0_25, %c384], %43 {strides = array<i32>} : memref<16x640xf32, #tpu.memory_space<vmem>>, vector<16x32xf32>,
    %45 = vector.extract_strided_slice %13 {offsets = [0, 9, 0], sizes = [16, 1, 32], strides = [1, 1, 1]} : vector<16x16x32xf32> to vector<16x1x32xf32>
    %46 = vector.shape_cast %45 : vector<16x1x32xf32> to vector<16x32xf32>
    %c0_26 = arith.constant 0 : index
    %c416 = arith.constant 416 : index
    %47 = vector.load %arg6[%c0_26, %c416] : memref<16x640xf32, #tpu.memory_space<vmem>>, vector<16x32xf32>
    tpu.vector_store %arg6[%c0_26, %c416], %46 {strides = array<i32>} : memref<16x640xf32, #tpu.memory_space<vmem>>, vector<16x32xf32>,
    %48 = vector.extract_strided_slice %13 {offsets = [0, 10, 0], sizes = [16, 1, 32], strides = [1, 1, 1]} : vector<16x16x32xf32> to vector<16x1x32xf32>
    %49 = vector.shape_cast %48 : vector<16x1x32xf32> to vector<16x32xf32>
    %c0_27 = arith.constant 0 : index
    %c448 = arith.constant 448 : index
    %50 = vector.load %arg6[%c0_27, %c448] : memref<16x640xf32, #tpu.memory_space<vmem>>, vector<16x32xf32>
    tpu.vector_store %arg6[%c0_27, %c448], %49 {strides = array<i32>} : memref<16x640xf32, #tpu.memory_space<vmem>>, vector<16x32xf32>,
    %51 = vector.extract_strided_slice %13 {offsets = [0, 11, 0], sizes = [16, 1, 32], strides = [1, 1, 1]} : vector<16x16x32xf32> to vector<16x1x32xf32>
    %52 = vector.shape_cast %51 : vector<16x1x32xf32> to vector<16x32xf32>
    %c0_28 = arith.constant 0 : index
    %c480 = arith.constant 480 : index
    %53 = vector.load %arg6[%c0_28, %c480] : memref<16x640xf32, #tpu.memory_space<vmem>>, vector<16x32xf32>
    tpu.vector_store %arg6[%c0_28, %c480], %52 {strides = array<i32>} : memref<16x640xf32, #tpu.memory_space<vmem>>, vector<16x32xf32>,
    %54 = vector.extract_strided_slice %13 {offsets = [0, 12, 0], sizes = [16, 1, 32], strides = [1, 1, 1]} : vector<16x16x32xf32> to vector<16x1x32xf32>
    %55 = vector.shape_cast %54 : vector<16x1x32xf32> to vector<16x32xf32>
    %c0_29 = arith.constant 0 : index
    %c512 = arith.constant 512 : index
    %56 = vector.load %arg6[%c0_29, %c512] : memref<16x640xf32, #tpu.memory_space<vmem>>, vector<16x32xf32>
    tpu.vector_store %arg6[%c0_29, %c512], %55 {strides = array<i32>} : memref<16x640xf32, #tpu.memory_space<vmem>>, vector<16x32xf32>,
    %57 = vector.extract_strided_slice %13 {offsets = [0, 13, 0], sizes = [16, 1, 32], strides = [1, 1, 1]} : vector<16x16x32xf32> to vector<16x1x32xf32>
    %58 = vector.shape_cast %57 : vector<16x1x32xf32> to vector<16x32xf32>
    %c0_30 = arith.constant 0 : index
    %c544 = arith.constant 544 : index
    %59 = vector.load %arg6[%c0_30, %c544] : memref<16x640xf32, #tpu.memory_space<vmem>>, vector<16x32xf32>
    tpu.vector_store %arg6[%c0_30, %c544], %58 {strides = array<i32>} : memref<16x640xf32, #tpu.memory_space<vmem>>, vector<16x32xf32>,
    %60 = vector.extract_strided_slice %13 {offsets = [0, 14, 0], sizes = [16, 1, 32], strides = [1, 1, 1]} : vector<16x16x32xf32> to vector<16x1x32xf32>
    %61 = vector.shape_cast %60 : vector<16x1x32xf32> to vector<16x32xf32>
    %c0_31 = arith.constant 0 : index
    %c576 = arith.constant 576 : index
    %62 = vector.load %arg6[%c0_31, %c576] : memref<16x640xf32, #tpu.memory_space<vmem>>, vector<16x32xf32>
    tpu.vector_store %arg6[%c0_31, %c576], %61 {strides = array<i32>} : memref<16x640xf32, #tpu.memory_space<vmem>>, vector<16x32xf32>,
    %63 = vector.extract_strided_slice %13 {offsets = [0, 15, 0], sizes = [16, 1, 32], strides = [1, 1, 1]} : vector<16x16x32xf32> to vector<16x1x32xf32>
    %64 = vector.shape_cast %63 : vector<16x1x32xf32> to vector<16x32xf32>
    %c0_32 = arith.constant 0 : index
    %c608 = arith.constant 608 : index
    %65 = vector.load %arg6[%c0_32, %c608] : memref<16x640xf32, #tpu.memory_space<vmem>>, vector<16x32xf32>
    tpu.vector_store %arg6[%c0_32, %c608], %64 {strides = array<i32>} : memref<16x640xf32, #tpu.memory_space<vmem>>, vector<16x32xf32>,
    return
  }
  func.func @transform_0(%arg0: i32) -> (i32, i32) {
    %c0_i32 = arith.constant 0 : i32
    %c0_i32_0 = arith.constant 0 : i32
    return %arg0, %c0_i32 : i32, i32
  }
  func.func @transform_1(%arg0: i32) -> (i32, i32) {
    %c0_i32 = arith.constant 0 : i32
    %c0_i32_0 = arith.constant 0 : i32
    %c0_i32_1 = arith.constant 0 : i32
    return %c0_i32, %c0_i32_0 : i32, i32
  }
  func.func @transform_2(%arg0: i32) -> (i32, i32) {
    %c0_i32 = arith.constant 0 : i32
    %c0_i32_0 = arith.constant 0 : i32
    %c0_i32_1 = arith.constant 0 : i32
    return %c0_i32, %c0_i32_0 : i32, i32
  }
  func.func @transform_3(%arg0: i32) -> (i32, i32) {
    %c0_i32 = arith.constant 0 : i32
    %c0_i32_0 = arith.constant 0 : i32
    %c0_i32_1 = arith.constant 0 : i32
    return %c0_i32, %c0_i32_0 : i32, i32
  }
  func.func @transform_4(%arg0: i32) -> (i32, i32) {
    %c0_i32 = arith.constant 0 : i32
    %c0_i32_0 = arith.constant 0 : i32
    %c0_i32_1 = arith.constant 0 : i32
    return %c0_i32, %c0_i32_0 : i32, i32
  }
  func.func @transform_5(%arg0: i32) -> (i32, i32) {
    %c0_i32 = arith.constant 0 : i32
    %c0_i32_0 = arith.constant 0 : i32
    return %arg0, %c0_i32 : i32, i32
  }
  func.func @transform_6(%arg0: i32) -> (i32, i32) {
    %c0_i32 = arith.constant 0 : i32
    %c0_i32_0 = arith.constant 0 : i32
    return %arg0, %c0_i32 : i32, i32
  }
}

</mosaic_0001>

<llo_original>
// kernel: temporal_encoder_ex_forward.3
$region0: #{temporal_encoder_ex_forward.3}
  #allocation0 [shape = 'u32[]', space=smem, size = 0x4, offset = 0x4, fixed_abs, tag = 'smem constant byte address 0x4 - core index']
  #allocation1 [shape = 'u32[72,128]{1,0:T(1,128)}', space=vmem, size = 0x9000, scoped, tag = 'internal scratch']
  %s0 = inlined_call_operand.vmem [shape: f32[16,640], index: 0, kind: input, shape index: {}, may-alias: {0,4}]
  %s1 = inlined_call_operand.vmem [shape: f32[16,128], index: 1, kind: input, shape index: {}]
  %s2 = inlined_call_operand.vmem [shape: f32[128,128], index: 2, kind: input, shape index: {}]
  %s3 = inlined_call_operand.vmem [shape: f32[16,128], index: 3, kind: input, shape index: {}]
  %s4 = inlined_call_operand.vmem [shape: f32[16,640], index: 4, kind: output, shape index: {}, may-alias: {0,4}]
  %s5 = sld [smem:[#allocation0]]
  $region56: #{temporal_encoder_ex_forward.3} parent=0
    _
  %s7 = ssub.s32 1, %s5
  %s8 = scalar_select 0, %s7, %s5
  $region1: #{temporal_encoder_ex_forward.3} parent=0
    #allocation2 [shape = 'u8[8192]{0}', space=vmem, size = 0x2000, scoped, tag = 'output window, operand 0, single buffered']
    // Predicated region
    $region2: #{temporal_encoder_ex_forward.3} parent=1 // pred_check
      _
    $region3: #{temporal_encoder_ex_forward.3} parent=1 // pred_check_branch
      %10 = sbr.rel (0) target = $region5
    $region4: #{temporal_encoder_ex_forward.3} parent=1 // pred_region
      _
    $region5: #{temporal_encoder_ex_forward.3} parent=1 // pred_fallthru
      _
    // Predicated region
    $region6: #{temporal_encoder_ex_forward.3} parent=1 // pred_check
      _
    $region7: #{temporal_encoder_ex_forward.3} parent=1 // pred_check_branch
      %12 = sbr.rel (0) target = $region9
    $region8: #{temporal_encoder_ex_forward.3} parent=1 // pred_region
      _
    $region9: #{temporal_encoder_ex_forward.3} parent=1 // pred_fallthru
      _
    // Predicated region
    $region10: #{temporal_encoder_ex_forward.3} parent=1 // pred_check
      _
    $region11: #{temporal_encoder_ex_forward.3} parent=1 // pred_check_branch
      %14 = sbr.rel (0) target = $region13
    $region12: #{temporal_encoder_ex_forward.3} parent=1 // pred_region
      _
    $region13: #{temporal_encoder_ex_forward.3} parent=1 // pred_fallthru
      _
    %v15 = vld [vmem:[%s1] sm:$0xff]
    %v16 = vld [vmem:[%s1 + $0x8] sm:$0xff]
    %v17 = vld [vmem:[%s2] sm:$0xff]
    %v18 = vld [vmem:[%s2 + $0x8] sm:$0xff]
    %v19 = vld [vmem:[%s2 + $0x10] sm:$0xff]
    %v20 = vld [vmem:[%s2 + $0x18] sm:$0xff]
    %v21 = vld [vmem:[%s2 + $0x20] sm:$0xff]
    %v22 = vld [vmem:[%s2 + $0x28] sm:$0xff]
    %v23 = vld [vmem:[%s2 + $0x30] sm:$0xff]
    %v24 = vld [vmem:[%s2 + $0x38] sm:$0xff]
    %v25 = vld [vmem:[%s2 + $0x40] sm:$0xff]
    %v26 = vld [vmem:[%s2 + $0x48] sm:$0xff]
    %v27 = vld [vmem:[%s2 + $0x50] sm:$0xff]
    %v28 = vld [vmem:[%s2 + $0x58] sm:$0xff]
    %v29 = vld [vmem:[%s2 + $0x60] sm:$0xff]
    %v30 = vld [vmem:[%s2 + $0x68] sm:$0xff]
    %v31 = vld [vmem:[%s2 + $0x70] sm:$0xff]
    %v32 = vld [vmem:[%s2 + $0x78] sm:$0xff]
    %v33 = vld [vmem:[%s3] sm:$0xff]
    %v34 = vld [vmem:[%s3 + $0x8] sm:$0xff]
    %35 = vmatpush.msra.mxu0 %v32
    %36 = vmatpush.msra.mxu0 %v31
    %37 = vmatpush.msra.mxu0 %v30
    %38 = vmatpush.msra.mxu0 %v29
    %39 = vmatpush.msra.mxu0 %v28
    %40 = vmatpush.msra.mxu0 %v27
    %41 = vmatpush.msra.mxu0 %v26
    %42 = vmatpush.msra.mxu0 %v25
    %43 = vmatpush.msra.mxu0 %v24
    %44 = vmatpush.msra.mxu0 %v23
    %45 = vmatpush.msra.mxu0 %v22
    %46 = vmatpush.msra.mxu0 %v21
    %47 = vmatpush.msra.mxu0 %v20
    %48 = vmatpush.msra.mxu0 %v19
    %49 = vmatpush.msra.mxu0 %v18
    %50 = vmatpush.msra.mxu0 %v17
    %51 = vmatmul.f32.gmra.mxu0 %v15
    %v52 = vpop.f32.mrf.mxu0
    %v53 = vadd.f32 %v33, %v52
    %54 = vmatmul.f32.gmra.mxu0 %v16
    %v55 = vpop.f32.mrf.mxu0
    %v56 = vadd.f32 %v34, %v55
    %57 = vdwg.mxu0
    %58 = vst [vmem:[#allocation2] sm:$0xff] %v53
    %59 = vst [vmem:[#allocation2 + $0x8] sm:$0xff] %v56
    // Predicated region
    $region14: #{temporal_encoder_ex_forward.3} parent=1 // pred_check
      _
    $region15: #{temporal_encoder_ex_forward.3} parent=1 // pred_check_branch
      %61 = sbr.rel (0) target = $region17
    $region16: #{temporal_encoder_ex_forward.3} parent=1 // pred_region
      // Predicated region
      $region18: #{temporal_encoder_ex_forward.3} parent=16 // pred_check
        _
      $region19: #{temporal_encoder_ex_forward.3} parent=16 // pred_check_branch
        %63 = sbr.rel (0) target = $region21
      $region20: #{temporal_encoder_ex_forward.3} parent=16 // pred_region
        // Predicated region
        $region22: #{temporal_encoder_ex_forward.3} parent=20 // pred_check
          _
        $region23: #{temporal_encoder_ex_forward.3} parent=20 // pred_check_branch
          %65 = sbr.rel (0) target = $region25
        $region24: #{temporal_encoder_ex_forward.3} parent=20 // pred_region
          // Predicated region
          $region37: #{temporal_encoder_ex_forward.3} parent=24 // pred_check
            _
          $region38: #{temporal_encoder_ex_forward.3} parent=24 // pred_check_branch
            %83 = sbr.rel (0) target = $region40
          $region39: #{temporal_encoder_ex_forward.3} parent=24 // pred_region
            loop: start=0, step=1, limit=1
            $region41: #{temporal_encoder_ex_forward.3} parent=39 // loop_pre_header
              _
            $region42: #{temporal_encoder_ex_forward.3} parent=39 // loop_header
              %s85 = sphi 0, %s89
              %p86 = scmp.ge.s32.totalorder %s85, 1
              %s90 = sphi [#allocation2], [#allocation2]
              %s91 = sphi %s4, %s4
            $region43: #{temporal_encoder_ex_forward.3} parent=39 // loop_header_branch
              %88 = sbr.rel (%p86) target = $region47
            $region44: #{temporal_encoder_ex_forward.3} parent=39 // loop_body
              %v92 = vld [vmem:[%s90] sm:$0xff]
              %93 = vst [vmem:[%s91] sm:$0xff] %v92
              %v94 = vld [vmem:[%s90 + $0x8] sm:$0xff]
              %95 = vst [vmem:[%s91 + $0x28] sm:$0xff] %v94
            $region45: #{temporal_encoder_ex_forward.3} parent=39 // loop_footer
              %s89 = sadd.s32 1, %s85
            $region46: #{temporal_encoder_ex_forward.3} parent=39 // loop_footer_branch
              %84 = sbr.rel target = $region42
            $region47: #{temporal_encoder_ex_forward.3} parent=39 // loop_exit
              _
          $region40: #{temporal_encoder_ex_forward.3} parent=24 // pred_fallthru
            _
          // Predicated region
          $region48: #{temporal_encoder_ex_forward.3} parent=24 // pred_check
            _
          $region49: #{temporal_encoder_ex_forward.3} parent=24 // pred_check_branch
            %97 = sbr.rel target = $region51
          $region50: #{temporal_encoder_ex_forward.3} parent=24 // pred_region
            _
          $region51: #{temporal_encoder_ex_forward.3} parent=24 // pred_fallthru
            _
        $region25: #{temporal_encoder_ex_forward.3} parent=20 // pred_fallthru
          _
        // Predicated region
        $region26: #{temporal_encoder_ex_forward.3} parent=20 // pred_check
          _
        $region27: #{temporal_encoder_ex_forward.3} parent=20 // pred_check_branch
          %67 = sbr.rel target = $region29
        $region28: #{temporal_encoder_ex_forward.3} parent=20 // pred_region
          %s69 = ssub.s32 256, 1
          loop: start=0, step=1, limit=1
          $region30: #{temporal_encoder_ex_forward.3} parent=28 // loop_pre_header
            _
          $region31: #{temporal_encoder_ex_forward.3} parent=28 // loop_header
            %s71 = sphi 0, %s75
            %p72 = scmp.ge.s32.totalorder %s71, 1
            %s76 = sphi [#allocation2], [#allocation2]
            %s77 = sphi %s4, %s4
          $region32: #{temporal_encoder_ex_forward.3} parent=28 // loop_header_branch
            %74 = sbr.rel (%p72) target = $region36
          $region33: #{temporal_encoder_ex_forward.3} parent=28 // loop_body
            %v78 = vld [vmem:[%s76] sm:%s69]
            %79 = vst [vmem:[%s77] sm:%s69] %v78
            %v80 = vld [vmem:[%s76 + $0x8] sm:%s69]
            %81 = vst [vmem:[%s77 + $0x28] sm:%s69] %v80
          $region34: #{temporal_encoder_ex_forward.3} parent=28 // loop_footer
            %s75 = sadd.s32 1, %s71
          $region35: #{temporal_encoder_ex_forward.3} parent=28 // loop_footer_branch
            %70 = sbr.rel target = $region31
          $region36: #{temporal_encoder_ex_forward.3} parent=28 // loop_exit
            _
        $region29: #{temporal_encoder_ex_forward.3} parent=20 // pred_fallthru
          _
      $region21: #{temporal_encoder_ex_forward.3} parent=16 // pred_fallthru
        _
      %98 = vnop
    $region17: #{temporal_encoder_ex_forward.3} parent=1 // pred_fallthru
      _
    // Predicated region
    $region52: #{temporal_encoder_ex_forward.3} parent=1 // pred_check
      _
    $region53: #{temporal_encoder_ex_forward.3} parent=1 // pred_check_branch
      %100 = sbr.rel (0) target = $region55
    $region54: #{temporal_encoder_ex_forward.3} parent=1 // pred_region
      _
    $region55: #{temporal_encoder_ex_forward.3} parent=1 // pred_fallthru
      _

// kernel: temporal_encoder_ex_forward.2
$region0: #{temporal_encoder_ex_forward.2}
  #allocation0 [shape = 'u32[]', space=smem, size = 0x4, offset = 0x4, fixed_abs, tag = 'smem constant byte address 0x4 - core index']
  #allocation1 [shape = 'u32[72,128]{1,0:T(1,128)}', space=vmem, size = 0x9000, scoped, tag = 'internal scratch']
  %s0 = inlined_call_operand.vmem [shape: f32[256,4], index: 0, kind: input, shape index: {}]
  %s1 = inlined_call_operand.vmem [shape: f32[4,32], index: 1, kind: input, shape index: {}]
  %s2 = inlined_call_operand.vmem [shape: f32[1,32], index: 2, kind: input, shape index: {}]
  %s3 = inlined_call_operand.vmem [shape: f32[32,32], index: 3, kind: input, shape index: {}]
  %s4 = inlined_call_operand.vmem [shape: f32[1,32], index: 4, kind: input, shape index: {}]
  %s5 = inlined_call_operand.vmem [shape: f32[16,640], index: 5, kind: output, shape index: {0}]
  %s6 = inlined_call_operand.vmem [shape: f32[16,32], index: 6, kind: output, shape index: {1}]
  %7 = xla_tuple %s5, %s6
  %s8 = sld [smem:[#allocation0]]
  $region38: #{temporal_encoder_ex_forward.2} parent=0
    _
  %s10 = ssub.s32 1, %s8
  %s11 = scalar_select 0, %s10, %s8
  // Predicated region
  $region2: #{temporal_encoder_ex_forward.2} parent=0 // pred_check
    _
  $region3: #{temporal_encoder_ex_forward.2} parent=0 // pred_check_branch
    %13 = sbr.rel (0) target = $region5
  $region4: #{temporal_encoder_ex_forward.2} parent=0 // pred_region
    _
  $region5: #{temporal_encoder_ex_forward.2} parent=0 // pred_fallthru
    _
  // Predicated region
  $region6: #{temporal_encoder_ex_forward.2} parent=0 // pred_check
    _
  $region7: #{temporal_encoder_ex_forward.2} parent=0 // pred_check_branch
    %15 = sbr.rel (0) target = $region9
  $region8: #{temporal_encoder_ex_forward.2} parent=0 // pred_region
    _
  $region9: #{temporal_encoder_ex_forward.2} parent=0 // pred_fallthru
    _
  // Predicated region
  $region10: #{temporal_encoder_ex_forward.2} parent=0 // pred_check
    _
  $region11: #{temporal_encoder_ex_forward.2} parent=0 // pred_check_branch
    %17 = sbr.rel (0) target = $region13
  $region12: #{temporal_encoder_ex_forward.2} parent=0 // pred_region
    _
  $region13: #{temporal_encoder_ex_forward.2} parent=0 // pred_fallthru
    _
  // Predicated region
  $region14: #{temporal_encoder_ex_forward.2} parent=0 // pred_check
    _
  $region15: #{temporal_encoder_ex_forward.2} parent=0 // pred_check_branch
    %19 = sbr.rel (0) target = $region17
  $region16: #{temporal_encoder_ex_forward.2} parent=0 // pred_region
    _
  $region17: #{temporal_encoder_ex_forward.2} parent=0 // pred_fallthru
    _
  // Predicated region
  $region18: #{temporal_encoder_ex_forward.2} parent=0 // pred_check
    _
  $region19: #{temporal_encoder_ex_forward.2} parent=0 // pred_check_branch
    %21 = sbr.rel (0) target = $region21
  $region20: #{temporal_encoder_ex_forward.2} parent=0 // pred_region
    _
  $region21: #{temporal_encoder_ex_forward.2} parent=0 // pred_fallthru
    _
  %v22 = vld [vmem:[%s0] sm:$0xff]
  %v23 = vld [vmem:[%s0 + $0x8] sm:$0xff]
  %v24 = vld [vmem:[%s0 + $0x10] sm:$0xff]
  %v25 = vld [vmem:[%s0 + $0x18] sm:$0xff]
  %v26 = vld [vmem:[%s0 + $0x20] sm:$0xff]
  %v27 = vld [vmem:[%s0 + $0x28] sm:$0xff]
  %v28 = vld [vmem:[%s0 + $0x30] sm:$0xff]
  %v29 = vld [vmem:[%s0 + $0x38] sm:$0xff]
  %v30 = vld [vmem:[%s0 + $0x40] sm:$0xff]
  %v31 = vld [vmem:[%s0 + $0x48] sm:$0xff]
  %v32 = vld [vmem:[%s0 + $0x50] sm:$0xff]
  %v33 = vld [vmem:[%s0 + $0x58] sm:$0xff]
  %v34 = vld [vmem:[%s0 + $0x60] sm:$0xff]
  %v35 = vld [vmem:[%s0 + $0x68] sm:$0xff]
  %v36 = vld [vmem:[%s0 + $0x70] sm:$0xff]
  %v37 = vld [vmem:[%s0 + $0x78] sm:$0xff]
  %v38 = vld [vmem:[%s0 + $0x80] sm:$0xff]
  %v39 = vld [vmem:[%s0 + $0x88] sm:$0xff]
  %v40 = vld [vmem:[%s0 + $0x90] sm:$0xff]
  %v41 = vld [vmem:[%s0 + $0x98] sm:$0xff]
  %v42 = vld [vmem:[%s0 + $0xa0] sm:$0xff]
  %v43 = vld [vmem:[%s0 + $0xa8] sm:$0xff]
  %v44 = vld [vmem:[%s0 + $0xb0] sm:$0xff]
  %v45 = vld [vmem:[%s0 + $0xb8] sm:$0xff]
  %v46 = vld [vmem:[%s0 + $0xc0] sm:$0xff]
  %v47 = vld [vmem:[%s0 + $0xc8] sm:$0xff]
  %v48 = vld [vmem:[%s0 + $0xd0] sm:$0xff]
  %v49 = vld [vmem:[%s0 + $0xd8] sm:$0xff]
  %v50 = vld [vmem:[%s0 + $0xe0] sm:$0xff]
  %v51 = vld [vmem:[%s0 + $0xe8] sm:$0xff]
  %v52 = vld [vmem:[%s0 + $0xf0] sm:$0xff]
  %v53 = vld [vmem:[%s0 + $0xf8] sm:$0xff]
  %v54 = vld [vmem:[%s1] sm:$0xf]
  %v55 = vld [vmem:[%s2] sm:$0x1]
  %v57 = vperm.slane %v55, 0
  %vm59 = vcmask 31744
  %v61 = vsel %vm59, %v22, 0
  %v64 = vsel %vm59, %v23, 0
  %v67 = vsel %vm59, %v24, 0
  %v70 = vsel %vm59, %v25, 0
  %v73 = vsel %vm59, %v26, 0
  %v76 = vsel %vm59, %v27, 0
  %v79 = vsel %vm59, %v28, 0
  %v82 = vsel %vm59, %v29, 0
  %v85 = vsel %vm59, %v30, 0
  %v88 = vsel %vm59, %v31, 0
  %v91 = vsel %vm59, %v32, 0
  %v94 = vsel %vm59, %v33, 0
  %v97 = vsel %vm59, %v34, 0
  %v100 = vsel %vm59, %v35, 0
  %v103 = vsel %vm59, %v36, 0
  %v106 = vsel %vm59, %v37, 0
  %v109 = vsel %vm59, %v38, 0
  %v112 = vsel %vm59, %v39, 0
  %v115 = vsel %vm59, %v40, 0
  %v118 = vsel %vm59, %v41, 0
  %v121 = vsel %vm59, %v42, 0
  %v124 = vsel %vm59, %v43, 0
  %v127 = vsel %vm59, %v44, 0
  %v130 = vsel %vm59, %v45, 0
  %v133 = vsel %vm59, %v46, 0
  %v136 = vsel %vm59, %v47, 0
  %v139 = vsel %vm59, %v48, 0
  %v142 = vsel %vm59, %v49, 0
  %v145 = vsel %vm59, %v50, 0
  %v148 = vsel %vm59, %v51, 0
  %v151 = vsel %vm59, %v52, 0
  %v154 = vsel %vm59, %v53, 0
  %vm156 = vcmask 1043456
  %v158 = vsel %vm156, %v54, 0
  %160 = vmatpush.msra.mxu0 0.0
  %161 = vmatpush.msra.mxu0 0.0
  %162 = vmatpush.msra.mxu0 0.0
  %163 = vmatpush.msra.mxu0 0.0
  %164 = vmatpush.msra.mxu0 0.0
  %165 = vmatpush.msra.mxu0 0.0
  %166 = vmatpush.msra.mxu0 0.0
  %167 = vmatpush.msra.mxu0 0.0
  %168 = vmatpush.msra.mxu0 0.0
  %169 = vmatpush.msra.mxu0 0.0
  %170 = vmatpush.msra.mxu0 0.0
  %171 = vmatpush.msra.mxu0 0.0
  %172 = vmatpush.msra.mxu0 0.0
  %173 = vmatpush.msra.mxu0 0.0
  %174 = vmatpush.msra.mxu0 0.0
  %175 = vmatpush.msra.mxu0 %v158
  %176 = vmatmul.f32.gmra.mxu0 %v61
  %v177 = vpop.f32.mrf.mxu0
  %v178 = vadd.f32 %v57, %v177
  %179 = vmatmul.f32.gmra.mxu0 %v64
  %v180 = vpop.f32.mrf.mxu0
  %v181 = vadd.f32 %v57, %v180
  %182 = vmatmul.f32.gmra.mxu0 %v67
  %v183 = vpop.f32.mrf.mxu0
  %v184 = vadd.f32 %v57, %v183
  %185 = vmatmul.f32.gmra.mxu0 %v70
  %v186 = vpop.f32.mrf.mxu0
  %v187 = vadd.f32 %v57, %v186
  %188 = vmatmul.f32.gmra.mxu0 %v73
  %v189 = vpop.f32.mrf.mxu0
  %v190 = vadd.f32 %v57, %v189
  %191 = vmatmul.f32.gmra.mxu0 %v76
  %v192 = vpop.f32.mrf.mxu0
  %v193 = vadd.f32 %v57, %v192
  %194 = vmatmul.f32.gmra.mxu0 %v79
  %v195 = vpop.f32.mrf.mxu0
  %v196 = vadd.f32 %v57, %v195
  %197 = vmatmul.f32.gmra.mxu0 %v82
  %v198 = vpop.f32.mrf.mxu0
  %v199 = vadd.f32 %v57, %v198
  %200 = vmatmul.f32.gmra.mxu0 %v85
  %v201 = vpop.f32.mrf.mxu0
  %v202 = vadd.f32 %v57, %v201
  %203 = vmatmul.f32.gmra.mxu0 %v88
  %v204 = vpop.f32.mrf.mxu0
  %v205 = vadd.f32 %v57, %v204
  %206 = vmatmul.f32.gmra.mxu0 %v91
  %v207 = vpop.f32.mrf.mxu0
  %v208 = vadd.f32 %v57, %v207
  %209 = vmatmul.f32.gmra.mxu0 %v94
  %v210 = vpop.f32.mrf.mxu0
  %v211 = vadd.f32 %v57, %v210
  %212 = vmatmul.f32.gmra.mxu0 %v97
  %v213 = vpop.f32.mrf.mxu0
  %v214 = vadd.f32 %v57, %v213
  %215 = vmatmul.f32.gmra.mxu0 %v100
  %v216 = vpop.f32.mrf.mxu0
  %v217 = vadd.f32 %v57, %v216
  %218 = vmatmul.f32.gmra.mxu0 %v103
  %v219 = vpop.f32.mrf.mxu0
  %v220 = vadd.f32 %v57, %v219
  %221 = vmatmul.f32.gmra.mxu0 %v106
  %v222 = vpop.f32.mrf.mxu0
  %v223 = vadd.f32 %v57, %v222
  %224 = vmatmul.f32.gmra.mxu0 %v109
  %v225 = vpop.f32.mrf.mxu0
  %v226 = vadd.f32 %v57, %v225
  %227 = vmatmul.f32.gmra.mxu0 %v112
  %v228 = vpop.f32.mrf.mxu0
  %v229 = vadd.f32 %v57, %v228
  %230 = vmatmul.f32.gmra.mxu0 %v115
  %v231 = vpop.f32.mrf.mxu0
  %v232 = vadd.f32 %v57, %v231
  %233 = vmatmul.f32.gmra.mxu0 %v118
  %v234 = vpop.f32.mrf.mxu0
  %v235 = vadd.f32 %v57, %v234
  %236 = vmatmul.f32.gmra.mxu0 %v121
  %v237 = vpop.f32.mrf.mxu0
  %v238 = vadd.f32 %v57, %v237
  %239 = vmatmul.f32.gmra.mxu0 %v124
  %v240 = vpop.f32.mrf.mxu0
  %v241 = vadd.f32 %v57, %v240
  %242 = vmatmul.f32.gmra.mxu0 %v127
  %v243 = vpop.f32.mrf.mxu0
  %v244 = vadd.f32 %v57, %v243
  %245 = vmatmul.f32.gmra.mxu0 %v130
  %v246 = vpop.f32.mrf.mxu0
  %v247 = vadd.f32 %v57, %v246
  %248 = vmatmul.f32.gmra.mxu0 %v133
  %v249 = vpop.f32.mrf.mxu0
  %v250 = vadd.f32 %v57, %v249
  %251 = vmatmul.f32.gmra.mxu0 %v136
  %v252 = vpop.f32.mrf.mxu0
  %v253 = vadd.f32 %v57, %v252
  %254 = vmatmul.f32.gmra.mxu0 %v139
  %v255 = vpop.f32.mrf.mxu0
  %v256 = vadd.f32 %v57, %v255
  %257 = vmatmul.f32.gmra.mxu0 %v142
  %v258 = vpop.f32.mrf.mxu0
  %v259 = vadd.f32 %v57, %v258
  %260 = vmatmul.f32.gmra.mxu0 %v145
  %v261 = vpop.f32.mrf.mxu0
  %v262 = vadd.f32 %v57, %v261
  %263 = vmatmul.f32.gmra.mxu0 %v148
  %v264 = vpop.f32.mrf.mxu0
  %v265 = vadd.f32 %v57, %v264
  %266 = vmatmul.f32.gmra.mxu0 %v151
  %v267 = vpop.f32.mrf.mxu0
  %v268 = vadd.f32 %v57, %v267
  %269 = vmatmul.f32.gmra.mxu0 %v154
  %v270 = vpop.f32.mrf.mxu0
  %v271 = vadd.f32 %v57, %v270
  %272 = vdwg.mxu0
  %v273 = vmax.f32 %v178, 0.0
  %v274 = vmax.f32 %v181, 0.0
  %v275 = vmax.f32 %v184, 0.0
  %v276 = vmax.f32 %v187, 0.0
  %v277 = vmax.f32 %v190, 0.0
  %v278 = vmax.f32 %v193, 0.0
  %v279 = vmax.f32 %v196, 0.0
  %v280 = vmax.f32 %v199, 0.0
  %v281 = vmax.f32 %v202, 0.0
  %v282 = vmax.f32 %v205, 0.0
  %v283 = vmax.f32 %v208, 0.0
  %v284 = vmax.f32 %v211, 0.0
  %v285 = vmax.f32 %v214, 0.0
  %v286 = vmax.f32 %v217, 0.0
  %v287 = vmax.f32 %v220, 0.0
  %v288 = vmax.f32 %v223, 0.0
  %v289 = vmax.f32 %v226, 0.0
  %v290 = vmax.f32 %v229, 0.0
  %v291 = vmax.f32 %v232, 0.0
  %v292 = vmax.f32 %v235, 0.0
  %v293 = vmax.f32 %v238, 0.0
  %v294 = vmax.f32 %v241, 0.0
  %v295 = vmax.f32 %v244, 0.0
  %v296 = vmax.f32 %v247, 0.0
  %v297 = vmax.f32 %v250, 0.0
  %v298 = vmax.f32 %v253, 0.0
  %v299 = vmax.f32 %v256, 0.0
  %v300 = vmax.f32 %v259, 0.0
  %v301 = vmax.f32 %v262, 0.0
  %v302 = vmax.f32 %v265, 0.0
  %v303 = vmax.f32 %v268, 0.0
  %v304 = vmax.f32 %v271, 0.0
  %v305 = vld [vmem:[%s3] sm:$0xff]
  %v306 = vld [vmem:[%s3 + $0x8] sm:$0xff]
  %v307 = vld [vmem:[%s3 + $0x10] sm:$0xff]
  %v308 = vld [vmem:[%s3 + $0x18] sm:$0xff]
  %v309 = vld [vmem:[%s4] sm:$0x1]
  %v311 = vperm.slane %v309, 0
  %vm313 = vcmask 261120
  %v315 = vsel %vm313, %v273, 0
  %v318 = vsel %vm313, %v274, 0
  %v321 = vsel %vm313, %v275, 0
  %v324 = vsel %vm313, %v276, 0
  %v327 = vsel %vm313, %v277, 0
  %v330 = vsel %vm313, %v278, 0
  %v333 = vsel %vm313, %v279, 0
  %v336 = vsel %vm313, %v280, 0
  %v339 = vsel %vm313, %v281, 0
  %v342 = vsel %vm313, %v282, 0
  %v345 = vsel %vm313, %v283, 0
  %v348 = vsel %vm313, %v284, 0
  %v351 = vsel %vm313, %v285, 0
  %v354 = vsel %vm313, %v286, 0
  %v357 = vsel %vm313, %v287, 0
  %v360 = vsel %vm313, %v288, 0
  %v363 = vsel %vm313, %v289, 0
  %v366 = vsel %vm313, %v290, 0
  %v369 = vsel %vm313, %v291, 0
  %v372 = vsel %vm313, %v292, 0
  %v375 = vsel %vm313, %v293, 0
  %v378 = vsel %vm313, %v294, 0
  %v381 = vsel %vm313, %v295, 0
  %v384 = vsel %vm313, %v296, 0
  %v387 = vsel %vm313, %v297, 0
  %v390 = vsel %vm313, %v298, 0
  %v393 = vsel %vm313, %v299, 0
  %v396 = vsel %vm313, %v300, 0
  %v399 = vsel %vm313, %v301, 0
  %v402 = vsel %vm313, %v302, 0
  %v405 = vsel %vm313, %v303, 0
  %v408 = vsel %vm313, %v304, 0
  %410 = vmatpush.msra.mxu0 0.0
  %411 = vmatpush.msra.mxu0 0.0
  %412 = vmatpush.msra.mxu0 0.0
  %413 = vmatpush.msra.mxu0 0.0
  %414 = vmatpush.msra.mxu0 0.0
  %415 = vmatpush.msra.mxu0 0.0
  %416 = vmatpush.msra.mxu0 0.0
  %417 = vmatpush.msra.mxu0 0.0
  %418 = vmatpush.msra.mxu0 0.0
  %419 = vmatpush.msra.mxu0 0.0
  %420 = vmatpush.msra.mxu0 0.0
  %421 = vmatpush.msra.mxu0 0.0
  %422 = vmatpush.msra.mxu0 %v308
  %423 = vmatpush.msra.mxu0 %v307
  %424 = vmatpush.msra.mxu0 %v306
  %425 = vmatpush.msra.mxu0 %v305
  %426 = vmatmul.f32.gmra.mxu0 %v315
  %v427 = vpop.f32.mrf.mxu0
  %v428 = vadd.f32 %v311, %v427
  %429 = vmatmul.f32.gmra.mxu0 %v318
  %v430 = vpop.f32.mrf.mxu0
  %v431 = vadd.f32 %v311, %v430
  %432 = vmatmul.f32.gmra.mxu0 %v321
  %v433 = vpop.f32.mrf.mxu0
  %v434 = vadd.f32 %v311, %v433
  %435 = vmatmul.f32.gmra.mxu0 %v324
  %v436 = vpop.f32.mrf.mxu0
  %v437 = vadd.f32 %v311, %v436
  %438 = vmatmul.f32.gmra.mxu0 %v327
  %v439 = vpop.f32.mrf.mxu0
  %v440 = vadd.f32 %v311, %v439
  %441 = vmatmul.f32.gmra.mxu0 %v330
  %v442 = vpop.f32.mrf.mxu0
  %v443 = vadd.f32 %v311, %v442
  %444 = vmatmul.f32.gmra.mxu0 %v333
  %v445 = vpop.f32.mrf.mxu0
  %v446 = vadd.f32 %v311, %v445
  %447 = vmatmul.f32.gmra.mxu0 %v336
  %v448 = vpop.f32.mrf.mxu0
  %v449 = vadd.f32 %v311, %v448
  %450 = vmatmul.f32.gmra.mxu0 %v339
  %v451 = vpop.f32.mrf.mxu0
  %v452 = vadd.f32 %v311, %v451
  %453 = vmatmul.f32.gmra.mxu0 %v342
  %v454 = vpop.f32.mrf.mxu0
  %v455 = vadd.f32 %v311, %v454
  %456 = vmatmul.f32.gmra.mxu0 %v345
  %v457 = vpop.f32.mrf.mxu0
  %v458 = vadd.f32 %v311, %v457
  %459 = vmatmul.f32.gmra.mxu0 %v348
  %v460 = vpop.f32.mrf.mxu0
  %v461 = vadd.f32 %v311, %v460
  %462 = vmatmul.f32.gmra.mxu0 %v351
  %v463 = vpop.f32.mrf.mxu0
  %v464 = vadd.f32 %v311, %v463
  %465 = vmatmul.f32.gmra.mxu0 %v354
  %v466 = vpop.f32.mrf.mxu0
  %v467 = vadd.f32 %v311, %v466
  %468 = vmatmul.f32.gmra.mxu0 %v357
  %v469 = vpop.f32.mrf.mxu0
  %v470 = vadd.f32 %v311, %v469
  %471 = vmatmul.f32.gmra.mxu0 %v360
  %v472 = vpop.f32.mrf.mxu0
  %v473 = vadd.f32 %v311, %v472
  %474 = vmatmul.f32.gmra.mxu0 %v363
  %v475 = vpop.f32.mrf.mxu0
  %v476 = vadd.f32 %v311, %v475
  %477 = vmatmul.f32.gmra.mxu0 %v366
  %v478 = vpop.f32.mrf.mxu0
  %v479 = vadd.f32 %v311, %v478
  %480 = vmatmul.f32.gmra.mxu0 %v369
  %v481 = vpop.f32.mrf.mxu0
  %v482 = vadd.f32 %v311, %v481
  %483 = vmatmul.f32.gmra.mxu0 %v372
  %v484 = vpop.f32.mrf.mxu0
  %v485 = vadd.f32 %v311, %v484
  %486 = vmatmul.f32.gmra.mxu0 %v375
  %v487 = vpop.f32.mrf.mxu0
  %v488 = vadd.f32 %v311, %v487
  %489 = vmatmul.f32.gmra.mxu0 %v378
  %v490 = vpop.f32.mrf.mxu0
  %v491 = vadd.f32 %v311, %v490
  %492 = vmatmul.f32.gmra.mxu0 %v381
  %v493 = vpop.f32.mrf.mxu0
  %v494 = vadd.f32 %v311, %v493
  %495 = vmatmul.f32.gmra.mxu0 %v384
  %v496 = vpop.f32.mrf.mxu0
  %v497 = vadd.f32 %v311, %v496
  %498 = vmatmul.f32.gmra.mxu0 %v387
  %v499 = vpop.f32.mrf.mxu0
  %v500 = vadd.f32 %v311, %v499
  %501 = vmatmul.f32.gmra.mxu0 %v390
  %v502 = vpop.f32.mrf.mxu0
  %v503 = vadd.f32 %v311, %v502
  %504 = vmatmul.f32.gmra.mxu0 %v393
  %v505 = vpop.f32.mrf.mxu0
  %v506 = vadd.f32 %v311, %v505
  %507 = vmatmul.f32.gmra.mxu0 %v396
  %v508 = vpop.f32.mrf.mxu0
  %v509 = vadd.f32 %v311, %v508
  %510 = vmatmul.f32.gmra.mxu0 %v399
  %v511 = vpop.f32.mrf.mxu0
  %v512 = vadd.f32 %v311, %v511
  %513 = vmatmul.f32.gmra.mxu0 %v402
  %v514 = vpop.f32.mrf.mxu0
  %v515 = vadd.f32 %v311, %v514
  %516 = vmatmul.f32.gmra.mxu0 %v405
  %v517 = vpop.f32.mrf.mxu0
  %v518 = vadd.f32 %v311, %v517
  %519 = vmatmul.f32.gmra.mxu0 %v408
  %v520 = vpop.f32.mrf.mxu0
  %v521 = vadd.f32 %v311, %v520
  %522 = vdwg.mxu0
  %v523 = vsel %vm313, %v428, 0.0
  %v524 = vsel %vm313, %v431, 0.0
  %v525 = vadd.f32 %v523, %v524
  %v526 = vrot.slane %v525, 4
  %v527 = vadd.f32 %v525, %v526
  %v528 = vrot.slane %v527, 2
  %v529 = vadd.f32 %v527, %v528
  %v530 = vrot.slane %v529, 1
  %v531 = vadd.f32 %v529, %v530
  %v532 = vsel %vm313, %v434, 0.0
  %v533 = vsel %vm313, %v437, 0.0
  %v534 = vadd.f32 %v532, %v533
  %v535 = vrot.slane %v534, 4
  %v536 = vadd.f32 %v534, %v535
  %v537 = vrot.slane %v536, 2
  %v538 = vadd.f32 %v536, %v537
  %v539 = vrot.slane %v538, 1
  %v540 = vadd.f32 %v538, %v539
  %v541 = vsel %vm313, %v440, 0.0
  %v542 = vsel %vm313, %v443, 0.0
  %v543 = vadd.f32 %v541, %v542
  %v544 = vrot.slane %v543, 4
  %v545 = vadd.f32 %v543, %v544
  %v546 = vrot.slane %v545, 2
  %v547 = vadd.f32 %v545, %v546
  %v548 = vrot.slane %v547, 1
  %v549 = vadd.f32 %v547, %v548
  %v550 = vsel %vm313, %v446, 0.0
  %v551 = vsel %vm313, %v449, 0.0
  %v552 = vadd.f32 %v550, %v551
  %v553 = vrot.slane %v552, 4
  %v554 = vadd.f32 %v552, %v553
  %v555 = vrot.slane %v554, 2
  %v556 = vadd.f32 %v554, %v555
  %v557 = vrot.slane %v556, 1
  %v558 = vadd.f32 %v556, %v557
  %v559 = vsel %vm313, %v452, 0.0
  %v560 = vsel %vm313, %v455, 0.0
  %v561 = vadd.f32 %v559, %v560
  %v562 = vrot.slane %v561, 4
  %v563 = vadd.f32 %v561, %v562
  %v564 = vrot.slane %v563, 2
  %v565 = vadd.f32 %v563, %v564
  %v566 = vrot.slane %v565, 1
  %v567 = vadd.f32 %v565, %v566
  %v568 = vsel %vm313, %v458, 0.0
  %v569 = vsel %vm313, %v461, 0.0
  %v570 = vadd.f32 %v568, %v569
  %v571 = vrot.slane %v570, 4
  %v572 = vadd.f32 %v570, %v571
  %v573 = vrot.slane %v572, 2
  %v574 = vadd.f32 %v572, %v573
  %v575 = vrot.slane %v574, 1
  %v576 = vadd.f32 %v574, %v575
  %v577 = vsel %vm313, %v464, 0.0
  %v578 = vsel %vm313, %v467, 0.0
  %v579 = vadd.f32 %v577, %v578
  %v580 = vrot.slane %v579, 4
  %v581 = vadd.f32 %v579, %v580
  %v582 = vrot.slane %v581, 2
  %v583 = vadd.f32 %v581, %v582
  %v584 = vrot.slane %v583, 1
  %v585 = vadd.f32 %v583, %v584
  %v586 = vsel %vm313, %v470, 0.0
  %v587 = vsel %vm313, %v473, 0.0
  %v588 = vadd.f32 %v586, %v587
  %v589 = vrot.slane %v588, 4
  %v590 = vadd.f32 %v588, %v589
  %v591 = vrot.slane %v590, 2
  %v592 = vadd.f32 %v590, %v591
  %v593 = vrot.slane %v592, 1
  %v594 = vadd.f32 %v592, %v593
  %v595 = vsel %vm313, %v476, 0.0
  %v596 = vsel %vm313, %v479, 0.0
  %v597 = vadd.f32 %v595, %v596
  %v598 = vrot.slane %v597, 4
  %v599 = vadd.f32 %v597, %v598
  %v600 = vrot.slane %v599, 2
  %v601 = vadd.f32 %v599, %v600
  %v602 = vrot.slane %v601, 1
  %v603 = vadd.f32 %v601, %v602
  %v604 = vsel %vm313, %v482, 0.0
  %v605 = vsel %vm313, %v485, 0.0
  %v606 = vadd.f32 %v604, %v605
  %v607 = vrot.slane %v606, 4
  %v608 = vadd.f32 %v606, %v607
  %v609 = vrot.slane %v608, 2
  %v610 = vadd.f32 %v608, %v609
  %v611 = vrot.slane %v610, 1
  %v612 = vadd.f32 %v610, %v611
  %v613 = vsel %vm313, %v488, 0.0
  %v614 = vsel %vm313, %v491, 0.0
  %v615 = vadd.f32 %v613, %v614
  %v616 = vrot.slane %v615, 4
  %v617 = vadd.f32 %v615, %v616
  %v618 = vrot.slane %v617, 2
  %v619 = vadd.f32 %v617, %v618
  %v620 = vrot.slane %v619, 1
  %v621 = vadd.f32 %v619, %v620
  %v622 = vsel %vm313, %v494, 0.0
  %v623 = vsel %vm313, %v497, 0.0
  %v624 = vadd.f32 %v622, %v623
  %v625 = vrot.slane %v624, 4
  %v626 = vadd.f32 %v624, %v625
  %v627 = vrot.slane %v626, 2
  %v628 = vadd.f32 %v626, %v627
  %v629 = vrot.slane %v628, 1
  %v630 = vadd.f32 %v628, %v629
  %v631 = vsel %vm313, %v500, 0.0
  %v632 = vsel %vm313, %v503, 0.0
  %v633 = vadd.f32 %v631, %v632
  %v634 = vrot.slane %v633, 4
  %v635 = vadd.f32 %v633, %v634
  %v636 = vrot.slane %v635, 2
  %v637 = vadd.f32 %v635, %v636
  %v638 = vrot.slane %v637, 1
  %v639 = vadd.f32 %v637, %v638
  %v640 = vsel %vm313, %v506, 0.0
  %v641 = vsel %vm313, %v509, 0.0
  %v642 = vadd.f32 %v640, %v641
  %v643 = vrot.slane %v642, 4
  %v644 = vadd.f32 %v642, %v643
  %v645 = vrot.slane %v644, 2
  %v646 = vadd.f32 %v644, %v645
  %v647 = vrot.slane %v646, 1
  %v648 = vadd.f32 %v646, %v647
  %v649 = vsel %vm313, %v512, 0.0
  %v650 = vsel %vm313, %v515, 0.0
  %v651 = vadd.f32 %v649, %v650
  %v652 = vrot.slane %v651, 4
  %v653 = vadd.f32 %v651, %v652
  %v654 = vrot.slane %v653, 2
  %v655 = vadd.f32 %v653, %v654
  %v656 = vrot.slane %v655, 1
  %v657 = vadd.f32 %v655, %v656
  %v658 = vsel %vm313, %v518, 0.0
  %v659 = vsel %vm313, %v521, 0.0
  %v660 = vadd.f32 %v658, %v659
  %v661 = vrot.slane %v660, 4
  %v662 = vadd.f32 %v660, %v661
  %v663 = vrot.slane %v662, 2
  %v664 = vadd.f32 %v662, %v663
  %v665 = vrot.slane %v664, 1
  %v666 = vadd.f32 %v664, %v665
  %vm683 = vcmask 1041409
  %v684 = vsel %vm683, %v540, %v531
  %vm685 = vcmask 1042434
  %v686 = vsel %vm685, %v549, %v684
  %vm687 = vcmask 1043459
  %v688 = vsel %vm687, %v558, %v686
  %vm689 = vcmask 1044484
  %v690 = vsel %vm689, %v567, %v688
  %vm691 = vcmask 1045509
  %v692 = vsel %vm691, %v576, %v690
  %vm693 = vcmask 1046534
  %v694 = vsel %vm693, %v585, %v692
  %vm695 = vcmask 1047559
  %v696 = vsel %vm695, %v594, %v694
  %v697 = vsel %vm683, %v612, %v603
  %v698 = vsel %vm685, %v621, %v697
  %v699 = vsel %vm687, %v630, %v698
  %v700 = vsel %vm689, %v639, %v699
  %v701 = vsel %vm691, %v648, %v700
  %v702 = vsel %vm693, %v657, %v701
  %v703 = vsel %vm695, %v666, %v702
  %706 = vst.msk [vmem:[%s6] sm:$0xff] %vm313, %v696
  %707 = vst.msk [vmem:[%s6 + $0x8] sm:$0xff] %vm313, %v703
  %708 = vst [vmem:[%s5] sm:$0xff] 0.0
  %709 = vst [vmem:[%s5 + $0x28] sm:$0xff] 0.0
  %v726 = vrot.slane %v434, 7
  %v727 = vsel %vm683, %v726, %v428
  %v728 = vrot.slane %v440, 6
  %v729 = vsel %vm685, %v728, %v727
  %v730 = vrot.slane %v446, 5
  %v731 = vsel %vm687, %v730, %v729
  %v732 = vrot.slane %v452, 4
  %v733 = vsel %vm689, %v732, %v731
  %v734 = vrot.slane %v458, 3
  %v735 = vsel %vm691, %v734, %v733
  %v736 = vrot.slane %v464, 2
  %v737 = vsel %vm693, %v736, %v735
  %v738 = vrot.slane %v470, 1
  %v739 = vsel %vm695, %v738, %v737
  %v740 = vrot.slane %v482, 7
  %v741 = vsel %vm683, %v740, %v476
  %v742 = vrot.slane %v488, 6
  %v743 = vsel %vm685, %v742, %v741
  %v744 = vrot.slane %v494, 5
  %v745 = vsel %vm687, %v744, %v743
  %v746 = vrot.slane %v500, 4
  %v747 = vsel %vm689, %v746, %v745
  %v748 = vrot.slane %v506, 3
  %v749 = vsel %vm691, %v748, %v747
  %v750 = vrot.slane %v512, 2
  %v751 = vsel %vm693, %v750, %v749
  %v752 = vrot.slane %v518, 1
  %v753 = vsel %vm695, %v752, %v751
  %756 = vst.msk [vmem:[%s5 + $0x8] sm:$0xff] %vm313, %v739
  %757 = vst.msk [vmem:[%s5 + $0x30] sm:$0xff] %vm313, %v753
  %v758 = vrot.slane %v428, 1
  %v759 = vsel %vm683, %v434, %v758
  %v760 = vrot.slane %v440, 7
  %v761 = vsel %vm685, %v760, %v759
  %v762 = vrot.slane %v446, 6
  %v763 = vsel %vm687, %v762, %v761
  %v764 = vrot.slane %v452, 5
  %v765 = vsel %vm689, %v764, %v763
  %v766 = vrot.slane %v458, 4
  %v767 = vsel %vm691, %v766, %v765
  %v768 = vrot.slane %v464, 3
  %v769 = vsel %vm693, %v768, %v767
  %v770 = vrot.slane %v470, 2
  %v771 = vsel %vm695, %v770, %v769
  %v772 = vrot.slane %v476, 1
  %v773 = vsel %vm683, %v482, %v772
  %v774 = vrot.slane %v488, 7
  %v775 = vsel %vm685, %v774, %v773
  %v776 = vrot.slane %v494, 6
  %v777 = vsel %vm687, %v776, %v775
  %v778 = vrot.slane %v500, 5
  %v779 = vsel %vm689, %v778, %v777
  %v780 = vrot.slane %v506, 4
  %v781 = vsel %vm691, %v780, %v779
  %v782 = vrot.slane %v512, 3
  %v783 = vsel %vm693, %v782, %v781
  %v784 = vrot.slane %v518, 2
  %v785 = vsel %vm695, %v784, %v783
  %786 = vrot.lane.b32.xlu0 %v771, 32
  %v787 = vpop.permute.xlu0 %786
  %788 = vrot.lane.b32.xlu0 %v785, 32
  %v789 = vpop.permute.xlu0 %788
  %vm792 = vcmask 523520
  %793 = vst.msk [vmem:[%s5 + $0x8] sm:$0xff] %vm792, %v787
  %794 = vst.msk [vmem:[%s5 + $0x30] sm:$0xff] %vm792, %v789
  %v795 = vrot.slane %v428, 2
  %v796 = vrot.slane %v434, 1
  %v797 = vsel %vm683, %v796, %v795
  %v798 = vsel %vm685, %v440, %v797
  %v799 = vrot.slane %v446, 7
  %v800 = vsel %vm687, %v799, %v798
  %v801 = vrot.slane %v452, 6
  %v802 = vsel %vm689, %v801, %v800
  %v803 = vrot.slane %v458, 5
  %v804 = vsel %vm691, %v803, %v802
  %v805 = vrot.slane %v464, 4
  %v806 = vsel %vm693, %v805, %v804
  %v807 = vrot.slane %v470, 3
  %v808 = vsel %vm695, %v807, %v806
  %v809 = vrot.slane %v476, 2
  %v810 = vrot.slane %v482, 1
  %v811 = vsel %vm683, %v810, %v809
  %v812 = vsel %vm685, %v488, %v811
  %v813 = vrot.slane %v494, 7
  %v814 = vsel %vm687, %v813, %v812
  %v815 = vrot.slane %v500, 6
  %v816 = vsel %vm689, %v815, %v814
  %v817 = vrot.slane %v506, 5
  %v818 = vsel %vm691, %v817, %v816
  %v819 = vrot.slane %v512, 4
  %v820 = vsel %vm693, %v819, %v818
  %v821 = vrot.slane %v518, 3
  %v822 = vsel %vm695, %v821, %v820
  %823 = vrot.lane.b32.xlu0 %v808, 64
  %v824 = vpop.permute.xlu0 %823
  %825 = vrot.lane.b32.xlu0 %v822, 64
  %v826 = vpop.permute.xlu0 %825
  %vm829 = vcmask 785920
  %830 = vst.msk [vmem:[%s5 + $0x8] sm:$0xff] %vm829, %v824
  %831 = vst.msk [vmem:[%s5 + $0x30] sm:$0xff] %vm829, %v826
  %v832 = vrot.slane %v428, 3
  %v833 = vrot.slane %v434, 2
  %v834 = vsel %vm683, %v833, %v832
  %v835 = vrot.slane %v440, 1
  %v836 = vsel %vm685, %v835, %v834
  %v837 = vsel %vm687, %v446, %v836
  %v838 = vrot.slane %v452, 7
  %v839 = vsel %vm689, %v838, %v837
  %v840 = vrot.slane %v458, 6
  %v841 = vsel %vm691, %v840, %v839
  %v842 = vrot.slane %v464, 5
  %v843 = vsel %vm693, %v842, %v841
  %v844 = vrot.slane %v470, 4
  %v845 = vsel %vm695, %v844, %v843
  %v846 = vrot.slane %v476, 3
  %v847 = vrot.slane %v482, 2
  %v848 = vsel %vm683, %v847, %v846
  %v849 = vrot.slane %v488, 1
  %v850 = vsel %vm685, %v849, %v848
  %v851 = vsel %vm687, %v494, %v850
  %v852 = vrot.slane %v500, 7
  %v853 = vsel %vm689, %v852, %v851
  %v854 = vrot.slane %v506, 6
  %v855 = vsel %vm691, %v854, %v853
  %v856 = vrot.slane %v512, 5
  %v857 = vsel %vm693, %v856, %v855
  %v858 = vrot.slane %v518, 4
  %v859 = vsel %vm695, %v858, %v857
  %860 = vrot.lane.b32.xlu0 %v845, 96
  %v861 = vpop.permute.xlu0 %860
  %862 = vrot.lane.b32.xlu0 %v859, 96
  %v863 = vpop.permute.xlu0 %862
  %vm866 = vcmask 1048320
  %867 = vst.msk [vmem:[%s5 + $0x8] sm:$0xff] %vm866, %v861
  %868 = vst.msk [vmem:[%s5 + $0x30] sm:$0xff] %vm866, %v863
  %v869 = vrot.slane %v428, 4
  %v870 = vrot.slane %v434, 3
  %v871 = vsel %vm683, %v870, %v869
  %v872 = vrot.slane %v440, 2
  %v873 = vsel %vm685, %v872, %v871
  %v874 = vrot.slane %v446, 1
  %v875 = vsel %vm687, %v874, %v873
  %v876 = vsel %vm689, %v452, %v875
  %v877 = vrot.slane %v458, 7
  %v878 = vsel %vm691, %v877, %v876
  %v879 = vrot.slane %v464, 6
  %v880 = vsel %vm693, %v879, %v878
  %v881 = vrot.slane %v470, 5
  %v882 = vsel %vm695, %v881, %v880
  %v883 = vrot.slane %v476, 4
  %v884 = vrot.slane %v482, 3
  %v885 = vsel %vm683, %v884, %v883
  %v886 = vrot.slane %v488, 2
  %v887 = vsel %vm685, %v886, %v885
  %v888 = vrot.slane %v494, 1
  %v889 = vsel %vm687, %v888, %v887
  %v890 = vsel %vm689, %v500, %v889
  %v891 = vrot.slane %v506, 7
  %v892 = vsel %vm691, %v891, %v890
  %v893 = vrot.slane %v512, 6
  %v894 = vsel %vm693, %v893, %v892
  %v895 = vrot.slane %v518, 5
  %v896 = vsel %vm695, %v895, %v894
  %899 = vst.msk [vmem:[%s5 + $0x10] sm:$0xff] %vm313, %v882
  %900 = vst.msk [vmem:[%s5 + $0x38] sm:$0xff] %vm313, %v896
  %v901 = vrot.slane %v428, 5
  %v902 = vrot.slane %v434, 4
  %v903 = vsel %vm683, %v902, %v901
  %v904 = vrot.slane %v440, 3
  %v905 = vsel %vm685, %v904, %v903
  %v906 = vrot.slane %v446, 2
  %v907 = vsel %vm687, %v906, %v905
  %v908 = vrot.slane %v452, 1
  %v909 = vsel %vm689, %v908, %v907
  %v910 = vsel %vm691, %v458, %v909
  %v911 = vrot.slane %v464, 7
  %v912 = vsel %vm693, %v911, %v910
  %v913 = vrot.slane %v470, 6
  %v914 = vsel %vm695, %v913, %v912
  %v915 = vrot.slane %v476, 5
  %v916 = vrot.slane %v482, 4
  %v917 = vsel %vm683, %v916, %v915
  %v918 = vrot.slane %v488, 3
  %v919 = vsel %vm685, %v918, %v917
  %v920 = vrot.slane %v494, 2
  %v921 = vsel %vm687, %v920, %v919
  %v922 = vrot.slane %v500, 1
  %v923 = vsel %vm689, %v922, %v921
  %v924 = vsel %vm691, %v506, %v923
  %v925 = vrot.slane %v512, 7
  %v926 = vsel %vm693, %v925, %v924
  %v927 = vrot.slane %v518, 6
  %v928 = vsel %vm695, %v927, %v926
  %929 = vrot.lane.b32.xlu0 %v914, 32
  %v930 = vpop.permute.xlu0 %929
  %931 = vrot.lane.b32.xlu0 %v928, 32
  %v932 = vpop.permute.xlu0 %931
  %935 = vst.msk [vmem:[%s5 + $0x10] sm:$0xff] %vm792, %v930
  %936 = vst.msk [vmem:[%s5 + $0x38] sm:$0xff] %vm792, %v932
  %v937 = vrot.slane %v428, 6
  %v938 = vrot.slane %v434, 5
  %v939 = vsel %vm683, %v938, %v937
  %v940 = vrot.slane %v440, 4
  %v941 = vsel %vm685, %v940, %v939
  %v942 = vrot.slane %v446, 3
  %v943 = vsel %vm687, %v942, %v941
  %v944 = vrot.slane %v452, 2
  %v945 = vsel %vm689, %v944, %v943
  %v946 = vrot.slane %v458, 1
  %v947 = vsel %vm691, %v946, %v945
  %v948 = vsel %vm693, %v464, %v947
  %v949 = vrot.slane %v470, 7
  %v950 = vsel %vm695, %v949, %v948
  %v951 = vrot.slane %v476, 6
  %v952 = vrot.slane %v482, 5
  %v953 = vsel %vm683, %v952, %v951
  %v954 = vrot.slane %v488, 4
  %v955 = vsel %vm685, %v954, %v953
  %v956 = vrot.slane %v494, 3
  %v957 = vsel %vm687, %v956, %v955
  %v958 = vrot.slane %v500, 2
  %v959 = vsel %vm689, %v958, %v957
  %v960 = vrot.slane %v506, 1
  %v961 = vsel %vm691, %v960, %v959
  %v962 = vsel %vm693, %v512, %v961
  %v963 = vrot.slane %v518, 7
  %v964 = vsel %vm695, %v963, %v962
  %965 = vrot.lane.b32.xlu0 %v950, 64
  %v966 = vpop.permute.xlu0 %965
  %967 = vrot.lane.b32.xlu0 %v964, 64
  %v968 = vpop.permute.xlu0 %967
  %971 = vst.msk [vmem:[%s5 + $0x10] sm:$0xff] %vm829, %v966
  %972 = vst.msk [vmem:[%s5 + $0x38] sm:$0xff] %vm829, %v968
  %v973 = vrot.slane %v428, 7
  %v974 = vrot.slane %v434, 6
  %v975 = vsel %vm683, %v974, %v973
  %v976 = vrot.slane %v440, 5
  %v977 = vsel %vm685, %v976, %v975
  %v978 = vrot.slane %v446, 4
  %v979 = vsel %vm687, %v978, %v977
  %v980 = vrot.slane %v452, 3
  %v981 = vsel %vm689, %v980, %v979
  %v982 = vrot.slane %v458, 2
  %v983 = vsel %vm691, %v982, %v981
  %v984 = vrot.slane %v464, 1
  %v985 = vsel %vm693, %v984, %v983
  %v986 = vsel %vm695, %v470, %v985
  %v987 = vrot.slane %v476, 7
  %v988 = vrot.slane %v482, 6
  %v989 = vsel %vm683, %v988, %v987
  %v990 = vrot.slane %v488, 5
  %v991 = vsel %vm685, %v990, %v989
  %v992 = vrot.slane %v494, 4
  %v993 = vsel %vm687, %v992, %v991
  %v994 = vrot.slane %v500, 3
  %v995 = vsel %vm689, %v994, %v993
  %v996 = vrot.slane %v506, 2
  %v997 = vsel %vm691, %v996, %v995
  %v998 = vrot.slane %v512, 1
  %v999 = vsel %vm693, %v998, %v997
  %v1000 = vsel %vm695, %v518, %v999
  %1001 = vrot.lane.b32.xlu0 %v986, 96
  %v1002 = vpop.permute.xlu0 %1001
  %1003 = vrot.lane.b32.xlu0 %v1000, 96
  %v1004 = vpop.permute.xlu0 %1003
  %1007 = vst.msk [vmem:[%s5 + $0x10] sm:$0xff] %vm866, %v1002
  %1008 = vst.msk [vmem:[%s5 + $0x38] sm:$0xff] %vm866, %v1004
  %v1025 = vrot.slane %v437, 7
  %v1026 = vsel %vm683, %v1025, %v431
  %v1027 = vrot.slane %v443, 6
  %v1028 = vsel %vm685, %v1027, %v1026
  %v1029 = vrot.slane %v449, 5
  %v1030 = vsel %vm687, %v1029, %v1028
  %v1031 = vrot.slane %v455, 4
  %v1032 = vsel %vm689, %v1031, %v1030
  %v1033 = vrot.slane %v461, 3
  %v1034 = vsel %vm691, %v1033, %v1032
  %v1035 = vrot.slane %v467, 2
  %v1036 = vsel %vm693, %v1035, %v1034
  %v1037 = vrot.slane %v473, 1
  %v1038 = vsel %vm695, %v1037, %v1036
  %v1039 = vrot.slane %v485, 7
  %v1040 = vsel %vm683, %v1039, %v479
  %v1041 = vrot.slane %v491, 6
  %v1042 = vsel %vm685, %v1041, %v1040
  %v1043 = vrot.slane %v497, 5
  %v1044 = vsel %vm687, %v1043, %v1042
  %v1045 = vrot.slane %v503, 4
  %v1046 = vsel %vm689, %v1045, %v1044
  %v1047 = vrot.slane %v509, 3
  %v1048 = vsel %vm691, %v1047, %v1046
  %v1049 = vrot.slane %v515, 2
  %v1050 = vsel %vm693, %v1049, %v1048
  %v1051 = vrot.slane %v521, 1
  %v1052 = vsel %vm695, %v1051, %v1050
  %1055 = vst.msk [vmem:[%s5 + $0x18] sm:$0xff] %vm313, %v1038
  %1056 = vst.msk [vmem:[%s5 + $0x40] sm:$0xff] %vm313, %v1052
  %v1057 = vrot.slane %v431, 1
  %v1058 = vsel %vm683, %v437, %v1057
  %v1059 = vrot.slane %v443, 7
  %v1060 = vsel %vm685, %v1059, %v1058
  %v1061 = vrot.slane %v449, 6
  %v1062 = vsel %vm687, %v1061, %v1060
  %v1063 = vrot.slane %v455, 5
  %v1064 = vsel %vm689, %v1063, %v1062
  %v1065 = vrot.slane %v461, 4
  %v1066 = vsel %vm691, %v1065, %v1064
  %v1067 = vrot.slane %v467, 3
  %v1068 = vsel %vm693, %v1067, %v1066
  %v1069 = vrot.slane %v473, 2
  %v1070 = vsel %vm695, %v1069, %v1068
  %v1071 = vrot.slane %v479, 1
  %v1072 = vsel %vm683, %v485, %v1071
  %v1073 = vrot.slane %v491, 7
  %v1074 = vsel %vm685, %v1073, %v1072
  %v1075 = vrot.slane %v497, 6
  %v1076 = vsel %vm687, %v1075, %v1074
  %v1077 = vrot.slane %v503, 5
  %v1078 = vsel %vm689, %v1077, %v1076
  %v1079 = vrot.slane %v509, 4
  %v1080 = vsel %vm691, %v1079, %v1078
  %v1081 = vrot.slane %v515, 3
  %v1082 = vsel %vm693, %v1081, %v1080
  %v1083 = vrot.slane %v521, 2
  %v1084 = vsel %vm695, %v1083, %v1082
  %1085 = vrot.lane.b32.xlu0 %v1070, 32
  %v1086 = vpop.permute.xlu0 %1085
  %1087 = vrot.lane.b32.xlu0 %v1084, 32
  %v1088 = vpop.permute.xlu0 %1087
  %1091 = vst.msk [vmem:[%s5 + $0x18] sm:$0xff] %vm792, %v1086
  %1092 = vst.msk [vmem:[%s5 + $0x40] sm:$0xff] %vm792, %v1088
  %v1093 = vrot.slane %v431, 2
  %v1094 = vrot.slane %v437, 1
  %v1095 = vsel %vm683, %v1094, %v1093
  %v1096 = vsel %vm685, %v443, %v1095
  %v1097 = vrot.slane %v449, 7
  %v1098 = vsel %vm687, %v1097, %v1096
  %v1099 = vrot.slane %v455, 6
  %v1100 = vsel %vm689, %v1099, %v1098
  %v1101 = vrot.slane %v461, 5
  %v1102 = vsel %vm691, %v1101, %v1100
  %v1103 = vrot.slane %v467, 4
  %v1104 = vsel %vm693, %v1103, %v1102
  %v1105 = vrot.slane %v473, 3
  %v1106 = vsel %vm695, %v1105, %v1104
  %v1107 = vrot.slane %v479, 2
  %v1108 = vrot.slane %v485, 1
  %v1109 = vsel %vm683, %v1108, %v1107
  %v1110 = vsel %vm685, %v491, %v1109
  %v1111 = vrot.slane %v497, 7
  %v1112 = vsel %vm687, %v1111, %v1110
  %v1113 = vrot.slane %v503, 6
  %v1114 = vsel %vm689, %v1113, %v1112
  %v1115 = vrot.slane %v509, 5
  %v1116 = vsel %vm691, %v1115, %v1114
  %v1117 = vrot.slane %v515, 4
  %v1118 = vsel %vm693, %v1117, %v1116
  %v1119 = vrot.slane %v521, 3
  %v1120 = vsel %vm695, %v1119, %v1118
  %1121 = vrot.lane.b32.xlu0 %v1106, 64
  %v1122 = vpop.permute.xlu0 %1121
  %1123 = vrot.lane.b32.xlu0 %v1120, 64
  %v1124 = vpop.permute.xlu0 %1123
  %1127 = vst.msk [vmem:[%s5 + $0x18] sm:$0xff] %vm829, %v1122
  %1128 = vst.msk [vmem:[%s5 + $0x40] sm:$0xff] %vm829, %v1124
  %v1129 = vrot.slane %v431, 3
  %v1130 = vrot.slane %v437, 2
  %v1131 = vsel %vm683, %v1130, %v1129
  %v1132 = vrot.slane %v443, 1
  %v1133 = vsel %vm685, %v1132, %v1131
  %v1134 = vsel %vm687, %v449, %v1133
  %v1135 = vrot.slane %v455, 7
  %v1136 = vsel %vm689, %v1135, %v1134
  %v1137 = vrot.slane %v461, 6
  %v1138 = vsel %vm691, %v1137, %v1136
  %v1139 = vrot.slane %v467, 5
  %v1140 = vsel %vm693, %v1139, %v1138
  %v1141 = vrot.slane %v473, 4
  %v1142 = vsel %vm695, %v1141, %v1140
  %v1143 = vrot.slane %v479, 3
  %v1144 = vrot.slane %v485, 2
  %v1145 = vsel %vm683, %v1144, %v1143
  %v1146 = vrot.slane %v491, 1
  %v1147 = vsel %vm685, %v1146, %v1145
  %v1148 = vsel %vm687, %v497, %v1147
  %v1149 = vrot.slane %v503, 7
  %v1150 = vsel %vm689, %v1149, %v1148
  %v1151 = vrot.slane %v509, 6
  %v1152 = vsel %vm691, %v1151, %v1150
  %v1153 = vrot.slane %v515, 5
  %v1154 = vsel %vm693, %v1153, %v1152
  %v1155 = vrot.slane %v521, 4
  %v1156 = vsel %vm695, %v1155, %v1154
  %1157 = vrot.lane.b32.xlu0 %v1142, 96
  %v1158 = vpop.permute.xlu0 %1157
  %1159 = vrot.lane.b32.xlu0 %v1156, 96
  %v1160 = vpop.permute.xlu0 %1159
  %1163 = vst.msk [vmem:[%s5 + $0x18] sm:$0xff] %vm866, %v1158
  %1164 = vst.msk [vmem:[%s5 + $0x40] sm:$0xff] %vm866, %v1160
  %v1165 = vrot.slane %v431, 4
  %v1166 = vrot.slane %v437, 3
  %v1167 = vsel %vm683, %v1166, %v1165
  %v1168 = vrot.slane %v443, 2
  %v1169 = vsel %vm685, %v1168, %v1167
  %v1170 = vrot.slane %v449, 1
  %v1171 = vsel %vm687, %v1170, %v1169
  %v1172 = vsel %vm689, %v455, %v1171
  %v1173 = vrot.slane %v461, 7
  %v1174 = vsel %vm691, %v1173, %v1172
  %v1175 = vrot.slane %v467, 6
  %v1176 = vsel %vm693, %v1175, %v1174
  %v1177 = vrot.slane %v473, 5
  %v1178 = vsel %vm695, %v1177, %v1176
  %v1179 = vrot.slane %v479, 4
  %v1180 = vrot.slane %v485, 3
  %v1181 = vsel %vm683, %v1180, %v1179
  %v1182 = vrot.slane %v491, 2
  %v1183 = vsel %vm685, %v1182, %v1181
  %v1184 = vrot.slane %v497, 1
  %v1185 = vsel %vm687, %v1184, %v1183
  %v1186 = vsel %vm689, %v503, %v1185
  %v1187 = vrot.slane %v509, 7
  %v1188 = vsel %vm691, %v1187, %v1186
  %v1189 = vrot.slane %v515, 6
  %v1190 = vsel %vm693, %v1189, %v1188
  %v1191 = vrot.slane %v521, 5
  %v1192 = vsel %vm695, %v1191, %v1190
  %1195 = vst.msk [vmem:[%s5 + $0x20] sm:$0xff] %vm313, %v1178
  %1196 = vst.msk [vmem:[%s5 + $0x48] sm:$0xff] %vm313, %v1192
  %v1197 = vrot.slane %v431, 5
  %v1198 = vrot.slane %v437, 4
  %v1199 = vsel %vm683, %v1198, %v1197
  %v1200 = vrot.slane %v443, 3
  %v1201 = vsel %vm685, %v1200, %v1199
  %v1202 = vrot.slane %v449, 2
  %v1203 = vsel %vm687, %v1202, %v1201
  %v1204 = vrot.slane %v455, 1
  %v1205 = vsel %vm689, %v1204, %v1203
  %v1206 = vsel %vm691, %v461, %v1205
  %v1207 = vrot.slane %v467, 7
  %v1208 = vsel %vm693, %v1207, %v1206
  %v1209 = vrot.slane %v473, 6
  %v1210 = vsel %vm695, %v1209, %v1208
  %v1211 = vrot.slane %v479, 5
  %v1212 = vrot.slane %v485, 4
  %v1213 = vsel %vm683, %v1212, %v1211
  %v1214 = vrot.slane %v491, 3
  %v1215 = vsel %vm685, %v1214, %v1213
  %v1216 = vrot.slane %v497, 2
  %v1217 = vsel %vm687, %v1216, %v1215
  %v1218 = vrot.slane %v503, 1
  %v1219 = vsel %vm689, %v1218, %v1217
  %v1220 = vsel %vm691, %v509, %v1219
  %v1221 = vrot.slane %v515, 7
  %v1222 = vsel %vm693, %v1221, %v1220
  %v1223 = vrot.slane %v521, 6
  %v1224 = vsel %vm695, %v1223, %v1222
  %1225 = vrot.lane.b32.xlu0 %v1210, 32
  %v1226 = vpop.permute.xlu0 %1225
  %1227 = vrot.lane.b32.xlu0 %v1224, 32
  %v1228 = vpop.permute.xlu0 %1227
  %1231 = vst.msk [vmem:[%s5 + $0x20] sm:$0xff] %vm792, %v1226
  %1232 = vst.msk [vmem:[%s5 + $0x48] sm:$0xff] %vm792, %v1228
  %v1233 = vrot.slane %v431, 6
  %v1234 = vrot.slane %v437, 5
  %v1235 = vsel %vm683, %v1234, %v1233
  %v1236 = vrot.slane %v443, 4
  %v1237 = vsel %vm685, %v1236, %v1235
  %v1238 = vrot.slane %v449, 3
  %v1239 = vsel %vm687, %v1238, %v1237
  %v1240 = vrot.slane %v455, 2
  %v1241 = vsel %vm689, %v1240, %v1239
  %v1242 = vrot.slane %v461, 1
  %v1243 = vsel %vm691, %v1242, %v1241
  %v1244 = vsel %vm693, %v467, %v1243
  %v1245 = vrot.slane %v473, 7
  %v1246 = vsel %vm695, %v1245, %v1244
  %v1247 = vrot.slane %v479, 6
  %v1248 = vrot.slane %v485, 5
  %v1249 = vsel %vm683, %v1248, %v1247
  %v1250 = vrot.slane %v491, 4
  %v1251 = vsel %vm685, %v1250, %v1249
  %v1252 = vrot.slane %v497, 3
  %v1253 = vsel %vm687, %v1252, %v1251
  %v1254 = vrot.slane %v503, 2
  %v1255 = vsel %vm689, %v1254, %v1253
  %v1256 = vrot.slane %v509, 1
  %v1257 = vsel %vm691, %v1256, %v1255
  %v1258 = vsel %vm693, %v515, %v1257
  %v1259 = vrot.slane %v521, 7
  %v1260 = vsel %vm695, %v1259, %v1258
  %1261 = vrot.lane.b32.xlu0 %v1246, 64
  %v1262 = vpop.permute.xlu0 %1261
  %1263 = vrot.lane.b32.xlu0 %v1260, 64
  %v1264 = vpop.permute.xlu0 %1263
  %1267 = vst.msk [vmem:[%s5 + $0x20] sm:$0xff] %vm829, %v1262
  %1268 = vst.msk [vmem:[%s5 + $0x48] sm:$0xff] %vm829, %v1264
  %v1269 = vrot.slane %v431, 7
  %v1270 = vrot.slane %v437, 6
  %v1271 = vsel %vm683, %v1270, %v1269
  %v1272 = vrot.slane %v443, 5
  %v1273 = vsel %vm685, %v1272, %v1271
  %v1274 = vrot.slane %v449, 4
  %v1275 = vsel %vm687, %v1274, %v1273
  %v1276 = vrot.slane %v455, 3
  %v1277 = vsel %vm689, %v1276, %v1275
  %v1278 = vrot.slane %v461, 2
  %v1279 = vsel %vm691, %v1278, %v1277
  %v1280 = vrot.slane %v467, 1
  %v1281 = vsel %vm693, %v1280, %v1279
  %v1282 = vsel %vm695, %v473, %v1281
  %v1283 = vrot.slane %v479, 7
  %v1284 = vrot.slane %v485, 6
  %v1285 = vsel %vm683, %v1284, %v1283
  %v1286 = vrot.slane %v491, 5
  %v1287 = vsel %vm685, %v1286, %v1285
  %v1288 = vrot.slane %v497, 4
  %v1289 = vsel %vm687, %v1288, %v1287
  %v1290 = vrot.slane %v503, 3
  %v1291 = vsel %vm689, %v1290, %v1289
  %v1292 = vrot.slane %v509, 2
  %v1293 = vsel %vm691, %v1292, %v1291
  %v1294 = vrot.slane %v515, 1
  %v1295 = vsel %vm693, %v1294, %v1293
  %v1296 = vsel %vm695, %v521, %v1295
  %1297 = vrot.lane.b32.xlu0 %v1282, 96
  %v1298 = vpop.permute.xlu0 %1297
  %1299 = vrot.lane.b32.xlu0 %v1296, 96
  %v1300 = vpop.permute.xlu0 %1299
  %1303 = vst.msk [vmem:[%s5 + $0x20] sm:$0xff] %vm866, %v1298
  %1304 = vst.msk [vmem:[%s5 + $0x48] sm:$0xff] %vm866, %v1300
  // Predicated region
  $region22: #{temporal_encoder_ex_forward.2} parent=0 // pred_check
    _
  $region23: #{temporal_encoder_ex_forward.2} parent=0 // pred_check_branch
    %1306 = sbr.rel (0) target = $region25
  $region24: #{temporal_encoder_ex_forward.2} parent=0 // pred_region
    _
  $region25: #{temporal_encoder_ex_forward.2} parent=0 // pred_fallthru
    _
  // Predicated region
  $region26: #{temporal_encoder_ex_forward.2} parent=0 // pred_check
    _
  $region27: #{temporal_encoder_ex_forward.2} parent=0 // pred_check_branch
    %1308 = sbr.rel (0) target = $region29
  $region28: #{temporal_encoder_ex_forward.2} parent=0 // pred_region
    _
  $region29: #{temporal_encoder_ex_forward.2} parent=0 // pred_fallthru
    _
  // Predicated region
  $region30: #{temporal_encoder_ex_forward.2} parent=0 // pred_check
    _
  $region31: #{temporal_encoder_ex_forward.2} parent=0 // pred_check_branch
    %1310 = sbr.rel (0) target = $region33
  $region32: #{temporal_encoder_ex_forward.2} parent=0 // pred_region
    _
  $region33: #{temporal_encoder_ex_forward.2} parent=0 // pred_fallthru
    _
  // Predicated region
  $region34: #{temporal_encoder_ex_forward.2} parent=0 // pred_check
    _
  $region35: #{temporal_encoder_ex_forward.2} parent=0 // pred_check_branch
    %1312 = sbr.rel (0) target = $region37
  $region36: #{temporal_encoder_ex_forward.2} parent=0 // pred_region
    _
  $region37: #{temporal_encoder_ex_forward.2} parent=0 // pred_fallthru
    _

</llo_original>
